<compile_context>
chip_gen: v7x
topology: tpu7x:2x2x1
jax: 0.10.0
libtpu: 0.0.40
codegen_flags: <defaults>
</compile_context>

<pallas_src>
import functools

import jax
import jax.numpy as jnp
from jax.experimental import pallas as pl
from jax.experimental.pallas import tpu as pltpu


# ----------------------------------------------------------------------------- kernel
def fused_stacked_attention_kernel(
    x_ref, mcol_ref, mrowt_ref, refcovt_ref, blkmask_ref, ssum_ref,
    wq_ref, bq_ref, wk_ref, bk_ref, wv_ref, bv_ref, wo_ref, bo_ref,
    gamma_ref, beta_ref, fg_ref, fb_ref,
    o_ref,
    *, num_layers, num_heads,
):
    """All AttentionBlocks + final LayerNorm (token 0 only), fully resident in VMEM."""
    B, L, H = x_ref.shape
    d_k = H // num_heads
    HL = num_heads * L                       # tiled (all-heads) key axis
    BL = B * L
    neg_inf = jnp.float32(-jnp.inf)
    eps = jnp.float32(1e-5)
    scale = jnp.float32(1.0 / (float(d_k) ** 0.5))

    # ---- layer-invariant tensors (computed ONCE) -------------------------------
    mcol = mcol_ref[...]                      # (B, L, 1)   f32 0/1
    mrow_t = mrowt_ref[...]                   # (B, 1, HL)  f32 0/1, per-head tiled
    valid_f = mcol * mrow_t                   # (B, L, HL)
    valid_t = valid_f > 0.5
    row_has_valid = jnp.max(valid_f, axis=-1, keepdims=True) > 0.5    # (B, L, 1)

    # refCov branch: abs -> mask -> softmax (per head-block; blocks are identical
    # copies so per-block sum == row sum / num_heads).
    rc = jnp.abs(refcovt_ref[...].astype(jnp.float32))                # (B, L, HL)
    rc = jnp.where(valid_t, rc, neg_inf)
    rc = jnp.where(row_has_valid, rc, 0.0)                            # all-inf rows -> 0
    rc = rc - jnp.max(rc, axis=-1, keepdims=True)
    rc_exp = jnp.exp(rc)
    ref_w = rc_exp * (jnp.float32(num_heads) *
                      pl.reciprocal(jnp.sum(rc_exp, axis=-1, keepdims=True),
                                    approx=True))                     # (B, L, HL)

    blkmask = blkmask_ref[...]                # (HL, H)  bf16 0/1: head(row)==head(feat)
    ssum = ssum_ref[...]                      # (HL, HL) f32 block-diag ones

    # activations held as (B*L, H) f32 for all row-wise ops
    x2 = x_ref[...].astype(jnp.float32).reshape(BL, H)

    for layer in range(num_layers):           # static unroll (NUM_LAYERS is small)
        residual = x2
        xb = x2.astype(jnp.bfloat16)

        # lane-aligned Q/K/V projections: bf16 MXU matmuls, f32 accumulate
        q2 = jnp.dot(xb, wq_ref[layer], preferred_element_type=jnp.float32) + bq_ref[layer]
        k2 = jnp.dot(xb, wk_ref[layer], preferred_element_type=jnp.float32) + bk_ref[layer]
        v2 = jnp.dot(xb, wv_ref[layer], preferred_element_type=jnp.float32) + bv_ref[layer]

        # cast ONCE per layer
        q3 = q2.astype(jnp.bfloat16).reshape(B, L, H)
        k3 = k2.astype(jnp.bfloat16).reshape(B, L, H)
        v3 = v2.astype(jnp.bfloat16).reshape(B, L, H)

        # block-diagonal expanded K/V: (B, HL, H); row h*L+k only keeps head-h features
        k_blk = jnp.concatenate([k3] * num_heads, axis=1) * blkmask   # (B, HL, H) bf16
        v_blk = jnp.concatenate([v3] * num_heads, axis=1) * blkmask   # (B, HL, H) bf16

        # all heads at once: scores[b, q, h*L + k] = <q_h(b,q), k_h(b,k)>
        scores = jnp.einsum('bqf,bjf->bqj', q3, k_blk,
                            preferred_element_type=jnp.float32) * scale   # (B, L, HL)
        scores = jnp.where(valid_t, scores, neg_inf)
        scores = jnp.where(row_has_valid, scores, 0.0)
        scores = scores - jnp.max(scores, axis=-1, keepdims=True)     # shared shift/block
        p = jnp.exp(scores)

        # per-head-block softmax denominator via block-diag ones matmul (exact, f32)
        den = jnp.dot(p.reshape(BL, HL), ssum,
                      preferred_element_type=jnp.float32).reshape(B, L, HL)
        attn_w = p * pl.reciprocal(den, approx=True)

        # attn_w and ref_w each sum to 1 per row -> normalization of the sum is *0.5
        comb = ((attn_w + ref_w) * 0.5).astype(jnp.bfloat16)

        # context already lands in concatenated-head (B, L, H) layout
        ctx = jnp.einsum('bqj,bjf->bqf', comb, v_blk,
                         preferred_element_type=jnp.float32)          # (B, L, H)
        attn_out = ctx.reshape(BL, H)

        out = jnp.dot(attn_out.astype(jnp.bfloat16), wo_ref[layer],
                      preferred_element_type=jnp.float32) + bo_ref[layer]
        y = residual + out

        mean = jnp.mean(y, axis=-1, keepdims=True)
        var = jnp.mean((y - mean) ** 2, axis=-1, keepdims=True)
        x2 = (y - mean) * jax.lax.rsqrt(var + eps) * gamma_ref[layer] + beta_ref[layer]

    # final LayerNorm, applied ONLY to token 0 of every batch element (all that is used)
    x_tok0 = x2.reshape(B, L, H)[:, 0, :]                             # (B, H)
    mean = jnp.mean(x_tok0, axis=-1, keepdims=True)
    var = jnp.mean((x_tok0 - mean) ** 2, axis=-1, keepdims=True)
    o_ref[...] = ((x_tok0 - mean) * jax.lax.rsqrt(var + eps) * fg_ref[...]
                  + fb_ref[...]).astype(o_ref.dtype)


# ----------------------------------------------------------------------------- wrapper
def process_node_feature(ts, msk):
    """Unpack packed node features (N, H) into padded (B, L, H). Plain-JAX glue.

    The ragged per-batch lengths make this a data-dependent gather, so it stays outside
    the kernel (matches the PyTorch process_node_feature loop)."""
    B, L = msk.shape
    lens = jnp.sum(msk, axis=1)                     # (B,)
    starts = jnp.cumsum(lens) - lens                # exclusive prefix sum
    pos = jnp.arange(L)[None, :]                    # (1, L)
    src = starts[:, None] + pos                     # (B, L)
    valid = pos < lens[:, None]
    src = jnp.where(valid, src, 0)
    gathered = ts[src]                              # (B, L, H)
    return jnp.where(valid[..., None], gathered, 0.0)


def stacked_attention_forward(x_nodes, mask, refcov, layer_params,
                              final_g, final_b, num_heads):
    B, L = mask.shape
    H = x_nodes.shape[-1]
    d_k = H // num_heads
    HL = num_heads * L
    num_layers = len(layer_params)

    inp = process_node_feature(x_nodes, mask)                         # (B, L, H)
    mask_f = mask.astype(jnp.float32)
    mcol = mask_f.reshape(B, L, 1)
    mrow_t = jnp.tile(mask_f.reshape(B, 1, L), (1, 1, num_heads))     # (B, 1, HL)
    refcov_t = jnp.tile(refcov.astype(jnp.float32), (1, 1, num_heads))  # (B, L, HL)

    # head-structure matrices (layer-invariant), built once outside the kernel
    head_of_row = jnp.arange(HL) // L                                 # head of tiled key
    head_of_feat = jnp.arange(H) // d_k                               # head of feature
    blkmask = (head_of_row[:, None] == head_of_feat[None, :]).astype(jnp.bfloat16)  # (HL,H)
    ssum = (head_of_row[:, None] == head_of_row[None, :]).astype(jnp.float32)       # (HL,HL)

    # stacked per-layer weights; separate lane-aligned Q/K/V slabs; bf16 MXU operands
    wq = jnp.stack([p[0] for p in layer_params]).astype(jnp.bfloat16)  # (NL, H, H)
    bq = jnp.stack([p[1] for p in layer_params])                       # (NL, 1, H)
    wk = jnp.stack([p[2] for p in layer_params]).astype(jnp.bfloat16)
    bk = jnp.stack([p[3] for p in layer_params])
    wv = jnp.stack([p[4] for p in layer_params]).astype(jnp.bfloat16)
    bv = jnp.stack([p[5] for p in layer_params])
    wo = jnp.stack([p[6] for p in layer_params]).astype(jnp.bfloat16)
    bo = jnp.stack([p[7] for p in layer_params])
    gamma = jnp.stack([p[8] for p in layer_params])
    beta = jnp.stack([p[9] for p in layer_params])

    kernel = functools.partial(fused_stacked_attention_kernel,
                               num_layers=num_layers, num_heads=num_heads)

    vmem_spec = pl.BlockSpec(memory_space=pltpu.MemorySpace.VMEM)
    n_inputs = 18

    out = pl.pallas_call(
        kernel,
        out_shape=jax.ShapeDtypeStruct((B, H), jnp.float32),
        in_specs=[vmem_spec] * n_inputs,
        out_specs=vmem_spec,
        compiler_params=pltpu.CompilerParams(vmem_limit_bytes=32 * 1024 * 1024),
    )(inp, mcol, mrow_t, refcov_t, blkmask, ssum,
      wq, bq, wk, bk, wv, bv, wo, bo, gamma, beta, final_g, final_b)

    return out                                                         # (B, H)


# ----------------------------------------------------------------------------- params
def init_layer_params(key, H):
    ks = jax.random.split(key, 8)
    s = 0.05
    wq = s * jax.random.normal(ks[0], (H, H), jnp.float32)
    bq = s * jax.random.normal(ks[1], (1, H), jnp.float32)
    wk = s * jax.random.normal(ks[2], (H, H), jnp.float32)
    bk = s * jax.random.normal(ks[3], (1, H), jnp.float32)
    wv = s * jax.random.normal(ks[4], (H, H), jnp.float32)
    bv = s * jax.random.normal(ks[5], (1, H), jnp.float32)
    wo = s * jax.random.normal(ks[6], (H, H), jnp.float32)
    bo = s * jax.random.normal(ks[7], (1, H), jnp.float32)
    g = jnp.ones((1, H), jnp.float32)
    beta = jnp.zeros((1, H), jnp.float32)
    return (wq, bq, wk, bk, wv, bv, wo, bo, g, beta)


# ----------------------------------------------------------------------------- main
if __name__ == "__main__":
    B, L, H, NUM_HEADS, NUM_LAYERS = 2, 8, 32, 4, 2

    key = jax.random.PRNGKey(0)
    k_x, k_rc, k_p = jax.random.split(key, 3)

    # prefix-style 1D mask: batch 0 has 6 valid tokens, batch 1 has 8
    mask = jnp.array([[1, 1, 1, 1, 1, 1, 0, 0],
                      [1, 1, 1, 1, 1, 1, 1, 1]], dtype=jnp.int32)
    n_total = int(jnp.sum(mask))                    # 14 packed node features
    x_nodes = jax.random.normal(k_x, (n_total, H), jnp.float32)
    refcov = jax.random.normal(k_rc, (B, L, L), jnp.float32)

    layer_keys = jax.random.split(k_p, NUM_LAYERS + 1)
    layer_params = [init_layer_params(layer_keys[i], H) for i in range(NUM_LAYERS)]
    final_g = jnp.ones((1, H), jnp.float32)
    final_b = jnp.zeros((1, H), jnp.float32)

    out = stacked_attention_forward(x_nodes, mask, refcov, layer_params,
                                    final_g, final_b, NUM_HEADS)
    out = jax.block_until_ready(out)
    assert out.shape == (B, H)
    assert bool(jnp.all(jnp.isfinite(out)))
    print("KERNEL_OK")
</pallas_src>

<mosaic_0001>
module attributes {stable_mosaic.version = 11 : i64} {
  func.func @fused_stacked_attention_kernel(%arg0: memref<2x8x32xf32, #tpu.memory_space<vmem>>, %arg1: memref<2x8x1xf32, #tpu.memory_space<vmem>>, %arg2: memref<2x1x32xf32, #tpu.memory_space<vmem>>, %arg3: memref<2x8x32xf32, #tpu.memory_space<vmem>>, %arg4: memref<32x32xbf16, #tpu.memory_space<vmem>>, %arg5: memref<32x32xf32, #tpu.memory_space<vmem>>, %arg6: memref<2x32x32xbf16, #tpu.memory_space<vmem>>, %arg7: memref<2x1x32xf32, #tpu.memory_space<vmem>>, %arg8: memref<2x32x32xbf16, #tpu.memory_space<vmem>>, %arg9: memref<2x1x32xf32, #tpu.memory_space<vmem>>, %arg10: memref<2x32x32xbf16, #tpu.memory_space<vmem>>, %arg11: memref<2x1x32xf32, #tpu.memory_space<vmem>>, %arg12: memref<2x32x32xbf16, #tpu.memory_space<vmem>>, %arg13: memref<2x1x32xf32, #tpu.memory_space<vmem>>, %arg14: memref<2x1x32xf32, #tpu.memory_space<vmem>>, %arg15: memref<2x1x32xf32, #tpu.memory_space<vmem>>, %arg16: memref<1x32xf32, #tpu.memory_space<vmem>>, %arg17: memref<1x32xf32, #tpu.memory_space<vmem>>, %arg18: memref<2x32xf32, #tpu.memory_space<vmem>>) attributes {dimension_semantics = [], scalar_prefetch = 0 : i64, scratch_operands = 0 : i64, tpu.core_type = #tpu.core_type<tc>} {
    %c0 = arith.constant 0 : index
    %c0_0 = arith.constant 0 : index
    %c0_1 = arith.constant 0 : index
    %0 = vector.load %arg1[%c0, %c0_0, %c0_1] : memref<2x8x1xf32, #tpu.memory_space<vmem>>, vector<2x8x1xf32>
    %c0_2 = arith.constant 0 : index
    %c0_3 = arith.constant 0 : index
    %c0_4 = arith.constant 0 : index
    %1 = vector.load %arg2[%c0_2, %c0_3, %c0_4] : memref<2x1x32xf32, #tpu.memory_space<vmem>>, vector<2x1x32xf32>
    %2 = vector.broadcast %0 : vector<2x8x1xf32> to vector<2x8x32xf32>
    %3 = vector.broadcast %1 : vector<2x1x32xf32> to vector<2x8x32xf32>
    %4 = arith.mulf %2, %3 : vector<2x8x32xf32>
    %cst = arith.constant 5.000000e-01 : f32
    %5 = vector.broadcast %cst : f32 to vector<2x8x32xf32>
    %6 = arith.cmpf ogt, %4, %5 : vector<2x8x32xf32>
    %cst_5 = arith.constant dense<0xFF800000> : vector<2x8xf32>
    %7 = vector.multi_reduction <maximumf>, %4, %cst_5 [2] : vector<2x8x32xf32> to vector<2x8xf32>
    %8 = vector.shape_cast %7 : vector<2x8xf32> to vector<2x8x1xf32>
    %cst_6 = arith.constant 5.000000e-01 : f32
    %9 = vector.broadcast %cst_6 : f32 to vector<2x8x1xf32>
    %10 = arith.cmpf ogt, %8, %9 : vector<2x8x1xf32>
    %c0_7 = arith.constant 0 : index
    %c0_8 = arith.constant 0 : index
    %c0_9 = arith.constant 0 : index
    %11 = vector.load %arg3[%c0_7, %c0_8, %c0_9] : memref<2x8x32xf32, #tpu.memory_space<vmem>>, vector<2x8x32xf32>
    %12 = math.absf %11 : vector<2x8x32xf32>
    %cst_10 = arith.constant 0xFF800000 : f32
    %13 = vector.broadcast %cst_10 : f32 to vector<2x8x32xf32>
    %14 = arith.select %6, %12, %13 : vector<2x8x32xi1>, vector<2x8x32xf32>
    %cst_11 = arith.constant 0.000000e+00 : f32
    %15 = vector.shape_cast %10 : vector<2x8x1xi1> to vector<2x8x1xi1>
    %16 = vector.broadcast %15 : vector<2x8x1xi1> to vector<2x8x32xi1>
    %17 = vector.broadcast %cst_11 : f32 to vector<2x8x32xf32>
    %18 = arith.select %16, %14, %17 : vector<2x8x32xi1>, vector<2x8x32xf32>
    %cst_12 = arith.constant dense<0xFF800000> : vector<2x8xf32>
    %19 = vector.multi_reduction <maximumf>, %18, %cst_12 [2] : vector<2x8x32xf32> to vector<2x8xf32>
    %20 = vector.shape_cast %19 : vector<2x8xf32> to vector<2x8x1xf32>
    %21 = vector.broadcast %20 : vector<2x8x1xf32> to vector<2x8x32xf32>
    %22 = arith.subf %18, %21 : vector<2x8x32xf32>
    %23 = math.exp %22 : vector<2x8x32xf32>
    %cst_13 = arith.constant dense<0.000000e+00> : vector<2x8xf32>
    %24 = vector.multi_reduction <add>, %23, %cst_13 [2] : vector<2x8x32xf32> to vector<2x8xf32>
    %25 = vector.shape_cast %24 : vector<2x8xf32> to vector<2x8x1xf32>
    %26 = tpu.reciprocal %25 {approx = true} : vector<2x8x1xf32> -> vector<2x8x1xf32>
    %cst_14 = arith.constant 4.000000e+00 : f32
    %27 = vector.broadcast %cst_14 : f32 to vector<2x8x1xf32>
    %28 = arith.mulf %27, %26 : vector<2x8x1xf32>
    %29 = vector.broadcast %28 : vector<2x8x1xf32> to vector<2x8x32xf32>
    %30 = arith.mulf %23, %29 : vector<2x8x32xf32>
    %c0_15 = arith.constant 0 : index
    %c0_16 = arith.constant 0 : index
    %31 = vector.load %arg4[%c0_15, %c0_16] : memref<32x32xbf16, #tpu.memory_space<vmem>>, vector<32x32xbf16>
    %c0_17 = arith.constant 0 : index
    %c0_18 = arith.constant 0 : index
    %32 = vector.load %arg5[%c0_17, %c0_18] : memref<32x32xf32, #tpu.memory_space<vmem>>, vector<32x32xf32>
    %c0_19 = arith.constant 0 : index
    %c0_20 = arith.constant 0 : index
    %c0_21 = arith.constant 0 : index
    %33 = vector.load %arg0[%c0_19, %c0_20, %c0_21] : memref<2x8x32xf32, #tpu.memory_space<vmem>>, vector<2x8x32xf32>
    %34 = vector.shape_cast %33 : vector<2x8x32xf32> to vector<16x32xf32>
    %35 = arith.truncf %34 : vector<16x32xf32> to vector<16x32xbf16>
    %c0_22 = arith.constant 0 : index
    %c0_23 = arith.constant 0 : index
    %c0_24 = arith.constant 0 : index
    %36 = vector.load %arg6[%c0_22, %c0_23, %c0_24] : memref<2x32x32xbf16, #tpu.memory_space<vmem>>, vector<1x32x32xbf16>
    %37 = vector.shape_cast %36 : vector<1x32x32xbf16> to vector<32x32xbf16>
    %cst_25 = arith.constant dense<0.000000e+00> : vector<16x32xf32>
    %38 = tpu.matmul %35, %37, %cst_25 {dimension_numbers = #tpu.dot_dimension_numbers<[1], [0], [0], [1], [0, 0, 1, 1], [], []>} : vector<16x32xbf16>, vector<32x32xbf16>, vector<16x32xf32> -> vector<16x32xf32>
    %c0_26 = arith.constant 0 : index
    %c0_27 = arith.constant 0 : index
    %c0_28 = arith.constant 0 : index
    %39 = vector.load %arg7[%c0_26, %c0_27, %c0_28] : memref<2x1x32xf32, #tpu.memory_space<vmem>>, vector<1x1x32xf32>
    %40 = vector.shape_cast %39 : vector<1x1x32xf32> to vector<1x32xf32>
    %41 = vector.broadcast %40 : vector<1x32xf32> to vector<16x32xf32>
    %42 = arith.addf %38, %41 : vector<16x32xf32>
    %c0_29 = arith.constant 0 : index
    %c0_30 = arith.constant 0 : index
    %c0_31 = arith.constant 0 : index
    %43 = vector.load %arg8[%c0_29, %c0_30, %c0_31] : memref<2x32x32xbf16, #tpu.memory_space<vmem>>, vector<1x32x32xbf16>
    %44 = vector.shape_cast %43 : vector<1x32x32xbf16> to vector<32x32xbf16>
    %cst_32 = arith.constant dense<0.000000e+00> : vector<16x32xf32>
    %45 = tpu.matmul %35, %44, %cst_32 {dimension_numbers = #tpu.dot_dimension_numbers<[1], [0], [0], [1], [0, 0, 1, 1], [], []>} : vector<16x32xbf16>, vector<32x32xbf16>, vector<16x32xf32> -> vector<16x32xf32>
    %c0_33 = arith.constant 0 : index
    %c0_34 = arith.constant 0 : index
    %c0_35 = arith.constant 0 : index
    %46 = vector.load %arg9[%c0_33, %c0_34, %c0_35] : memref<2x1x32xf32, #tpu.memory_space<vmem>>, vector<1x1x32xf32>
    %47 = vector.shape_cast %46 : vector<1x1x32xf32> to vector<1x32xf32>
    %48 = vector.broadcast %47 : vector<1x32xf32> to vector<16x32xf32>
    %49 = arith.addf %45, %48 : vector<16x32xf32>
    %c0_36 = arith.constant 0 : index
    %c0_37 = arith.constant 0 : index
    %c0_38 = arith.constant 0 : index
    %50 = vector.load %arg10[%c0_36, %c0_37, %c0_38] : memref<2x32x32xbf16, #tpu.memory_space<vmem>>, vector<1x32x32xbf16>
    %51 = vector.shape_cast %50 : vector<1x32x32xbf16> to vector<32x32xbf16>
    %cst_39 = arith.constant dense<0.000000e+00> : vector<16x32xf32>
    %52 = tpu.matmul %35, %51, %cst_39 {dimension_numbers = #tpu.dot_dimension_numbers<[1], [0], [0], [1], [0, 0, 1, 1], [], []>} : vector<16x32xbf16>, vector<32x32xbf16>, vector<16x32xf32> -> vector<16x32xf32>
    %c0_40 = arith.constant 0 : index
    %c0_41 = arith.constant 0 : index
    %c0_42 = arith.constant 0 : index
    %53 = vector.load %arg11[%c0_40, %c0_41, %c0_42] : memref<2x1x32xf32, #tpu.memory_space<vmem>>, vector<1x1x32xf32>
    %54 = vector.shape_cast %53 : vector<1x1x32xf32> to vector<1x32xf32>
    %55 = vector.broadcast %54 : vector<1x32xf32> to vector<16x32xf32>
    %56 = arith.addf %52, %55 : vector<16x32xf32>
    %57 = arith.truncf %42 : vector<16x32xf32> to vector<16x32xbf16>
    %58 = vector.shape_cast %57 : vector<16x32xbf16> to vector<2x8x32xbf16>
    %59 = arith.truncf %49 : vector<16x32xf32> to vector<16x32xbf16>
    %60 = vector.shape_cast %59 : vector<16x32xbf16> to vector<2x8x32xbf16>
    %61 = arith.truncf %56 : vector<16x32xf32> to vector<16x32xbf16>
    %62 = vector.shape_cast %61 : vector<16x32xbf16> to vector<2x8x32xbf16>
    %63 = tpu.concatenate %60, %60, %60, %60 in 1 : vector<2x8x32xbf16>, vector<2x8x32xbf16>, vector<2x8x32xbf16>, vector<2x8x32xbf16> -> vector<2x32x32xbf16>
    %64 = vector.shape_cast %31 : vector<32x32xbf16> to vector<1x32x32xbf16>
    %65 = vector.broadcast %64 : vector<1x32x32xbf16> to vector<2x32x32xbf16>
    %66 = arith.mulf %63, %65 : vector<2x32x32xbf16>
    %67 = tpu.concatenate %62, %62, %62, %62 in 1 : vector<2x8x32xbf16>, vector<2x8x32xbf16>, vector<2x8x32xbf16>, vector<2x8x32xbf16> -> vector<2x32x32xbf16>
    %68 = vector.shape_cast %31 : vector<32x32xbf16> to vector<1x32x32xbf16>
    %69 = vector.broadcast %68 : vector<1x32x32xbf16> to vector<2x32x32xbf16>
    %70 = arith.mulf %67, %69 : vector<2x32x32xbf16>
    "tpu.trace_start"() <{level = 10 : i32, message = "bqf,bjf->bqj"}> : () -> ()
    %cst_43 = arith.constant dense<0.000000e+00> : vector<2x8x32xf32>
    %71 = tpu.matmul %58, %66, %cst_43 {dimension_numbers = #tpu.dot_dimension_numbers<[2], [2], [1], [1], [0, 0, 0, 1, 1, 1], [0], [0]>} : vector<2x8x32xbf16>, vector<2x32x32xbf16>, vector<2x8x32xf32> -> vector<2x8x32xf32>
    "tpu.trace_stop"() : () -> ()
    %cst_44 = arith.constant 0.353553385 : f32
    %72 = vector.broadcast %cst_44 : f32 to vector<2x8x32xf32>
    %73 = arith.mulf %71, %72 : vector<2x8x32xf32>
    %cst_45 = arith.constant 0xFF800000 : f32
    %74 = vector.broadcast %cst_45 : f32 to vector<2x8x32xf32>
    %75 = arith.select %6, %73, %74 : vector<2x8x32xi1>, vector<2x8x32xf32>
    %cst_46 = arith.constant 0.000000e+00 : f32
    %76 = vector.shape_cast %10 : vector<2x8x1xi1> to vector<2x8x1xi1>
    %77 = vector.broadcast %76 : vector<2x8x1xi1> to vector<2x8x32xi1>
    %78 = vector.broadcast %cst_46 : f32 to vector<2x8x32xf32>
    %79 = arith.select %77, %75, %78 : vector<2x8x32xi1>, vector<2x8x32xf32>
    %cst_47 = arith.constant dense<0xFF800000> : vector<2x8xf32>
    %80 = vector.multi_reduction <maximumf>, %79, %cst_47 [2] : vector<2x8x32xf32> to vector<2x8xf32>
    %81 = vector.shape_cast %80 : vector<2x8xf32> to vector<2x8x1xf32>
    %82 = vector.broadcast %81 : vector<2x8x1xf32> to vector<2x8x32xf32>
    %83 = arith.subf %79, %82 : vector<2x8x32xf32>
    %84 = math.exp %83 : vector<2x8x32xf32>
    %85 = vector.shape_cast %84 : vector<2x8x32xf32> to vector<16x32xf32>
    %cst_48 = arith.constant dense<0.000000e+00> : vector<16x32xf32>
    %86 = tpu.matmul %85, %32, %cst_48 {dimension_numbers = #tpu.dot_dimension_numbers<[1], [0], [0], [1], [0, 0, 1, 1], [], []>} : vector<16x32xf32>, vector<32x32xf32>, vector<16x32xf32> -> vector<16x32xf32>
    %87 = vector.shape_cast %86 : vector<16x32xf32> to vector<2x8x32xf32>
    %88 = tpu.reciprocal %87 {approx = true} : vector<2x8x32xf32> -> vector<2x8x32xf32>
    %89 = arith.mulf %84, %88 : vector<2x8x32xf32>
    %90 = arith.addf %89, %30 : vector<2x8x32xf32>
    %cst_49 = arith.constant 5.000000e-01 : f32
    %91 = vector.broadcast %cst_49 : f32 to vector<2x8x32xf32>
    %92 = arith.mulf %90, %91 : vector<2x8x32xf32>
    %93 = arith.truncf %92 : vector<2x8x32xf32> to vector<2x8x32xbf16>
    "tpu.trace_start"() <{level = 10 : i32, message = "bqj,bjf->bqf"}> : () -> ()
    %cst_50 = arith.constant dense<0.000000e+00> : vector<2x8x32xf32>
    %94 = tpu.matmul %93, %70, %cst_50 {dimension_numbers = #tpu.dot_dimension_numbers<[2], [1], [1], [2], [0, 0, 0, 1, 1, 2], [0], [0]>} : vector<2x8x32xbf16>, vector<2x32x32xbf16>, vector<2x8x32xf32> -> vector<2x8x32xf32>
    "tpu.trace_stop"() : () -> ()
    %95 = vector.shape_cast %94 : vector<2x8x32xf32> to vector<16x32xf32>
    %96 = arith.truncf %95 : vector<16x32xf32> to vector<16x32xbf16>
    %c0_51 = arith.constant 0 : index
    %c0_52 = arith.constant 0 : index
    %c0_53 = arith.constant 0 : index
    %97 = vector.load %arg12[%c0_51, %c0_52, %c0_53] : memref<2x32x32xbf16, #tpu.memory_space<vmem>>, vector<1x32x32xbf16>
    %98 = vector.shape_cast %97 : vector<1x32x32xbf16> to vector<32x32xbf16>
    %cst_54 = arith.constant dense<0.000000e+00> : vector<16x32xf32>
    %99 = tpu.matmul %96, %98, %cst_54 {dimension_numbers = #tpu.dot_dimension_numbers<[1], [0], [0], [1], [0, 0, 1, 1], [], []>} : vector<16x32xbf16>, vector<32x32xbf16>, vector<16x32xf32> -> vector<16x32xf32>
    %c0_55 = arith.constant 0 : index
    %c0_56 = arith.constant 0 : index
    %c0_57 = arith.constant 0 : index
    %100 = vector.load %arg13[%c0_55, %c0_56, %c0_57] : memref<2x1x32xf32, #tpu.memory_space<vmem>>, vector<1x1x32xf32>
    %101 = vector.shape_cast %100 : vector<1x1x32xf32> to vector<1x32xf32>
    %102 = vector.broadcast %101 : vector<1x32xf32> to vector<16x32xf32>
    %103 = arith.addf %99, %102 : vector<16x32xf32>
    %104 = arith.addf %34, %103 : vector<16x32xf32>
    %cst_58 = arith.constant dense<0.000000e+00> : vector<16xf32>
    %105 = vector.multi_reduction <add>, %104, %cst_58 [1] : vector<16x32xf32> to vector<16xf32>
    %106 = vector.shape_cast %105 : vector<16xf32> to vector<16x1xf32>
    %cst_59 = arith.constant 3.200000e+01 : f32
    %107 = vector.broadcast %cst_59 : f32 to vector<16x1xf32>
    %108 = arith.divf %106, %107 : vector<16x1xf32>
    %109 = vector.broadcast %108 : vector<16x1xf32> to vector<16x32xf32>
    %110 = arith.subf %104, %109 : vector<16x32xf32>
    %111 = arith.mulf %110, %110 : vector<16x32xf32>
    %cst_60 = arith.constant dense<0.000000e+00> : vector<16xf32>
    %112 = vector.multi_reduction <add>, %111, %cst_60 [1] : vector<16x32xf32> to vector<16xf32>
    %113 = vector.shape_cast %112 : vector<16xf32> to vector<16x1xf32>
    %cst_61 = arith.constant 3.200000e+01 : f32
    %114 = vector.broadcast %cst_61 : f32 to vector<16x1xf32>
    %115 = arith.divf %113, %114 : vector<16x1xf32>
    %116 = vector.broadcast %108 : vector<16x1xf32> to vector<16x32xf32>
    %117 = arith.subf %104, %116 : vector<16x32xf32>
    %cst_62 = arith.constant 9.99999974E-6 : f32
    %118 = vector.broadcast %cst_62 : f32 to vector<16x1xf32>
    %119 = arith.addf %115, %118 : vector<16x1xf32>
    %120 = math.rsqrt %119 : vector<16x1xf32>
    %121 = vector.broadcast %120 : vector<16x1xf32> to vector<16x32xf32>
    %122 = arith.mulf %117, %121 : vector<16x32xf32>
    %c0_63 = arith.constant 0 : index
    %c0_64 = arith.constant 0 : index
    %c0_65 = arith.constant 0 : index
    %123 = vector.load %arg14[%c0_63, %c0_64, %c0_65] : memref<2x1x32xf32, #tpu.memory_space<vmem>>, vector<1x1x32xf32>
    %124 = vector.shape_cast %123 : vector<1x1x32xf32> to vector<1x32xf32>
    %125 = vector.broadcast %124 : vector<1x32xf32> to vector<16x32xf32>
    %126 = arith.mulf %122, %125 : vector<16x32xf32>
    %c0_66 = arith.constant 0 : index
    %c0_67 = arith.constant 0 : index
    %c0_68 = arith.constant 0 : index
    %127 = vector.load %arg15[%c0_66, %c0_67, %c0_68] : memref<2x1x32xf32, #tpu.memory_space<vmem>>, vector<1x1x32xf32>
    %128 = vector.shape_cast %127 : vector<1x1x32xf32> to vector<1x32xf32>
    %129 = vector.broadcast %128 : vector<1x32xf32> to vector<16x32xf32>
    %130 = arith.addf %126, %129 : vector<16x32xf32>
    %131 = arith.truncf %130 : vector<16x32xf32> to vector<16x32xbf16>
    %c1 = arith.constant 1 : index
    %c0_69 = arith.constant 0 : index
    %c0_70 = arith.constant 0 : index
    %132 = vector.load %arg6[%c1, %c0_69, %c0_70] : memref<2x32x32xbf16, #tpu.memory_space<vmem>>, vector<1x32x32xbf16>
    %133 = vector.shape_cast %132 : vector<1x32x32xbf16> to vector<32x32xbf16>
    %cst_71 = arith.constant dense<0.000000e+00> : vector<16x32xf32>
    %134 = tpu.matmul %131, %133, %cst_71 {dimension_numbers = #tpu.dot_dimension_numbers<[1], [0], [0], [1], [0, 0, 1, 1], [], []>} : vector<16x32xbf16>, vector<32x32xbf16>, vector<16x32xf32> -> vector<16x32xf32>
    %c1_72 = arith.constant 1 : index
    %c0_73 = arith.constant 0 : index
    %c0_74 = arith.constant 0 : index
    %135 = vector.load %arg7[%c1_72, %c0_73, %c0_74] : memref<2x1x32xf32, #tpu.memory_space<vmem>>, vector<1x1x32xf32>
    %136 = vector.shape_cast %135 : vector<1x1x32xf32> to vector<1x32xf32>
    %137 = vector.broadcast %136 : vector<1x32xf32> to vector<16x32xf32>
    %138 = arith.addf %134, %137 : vector<16x32xf32>
    %c1_75 = arith.constant 1 : index
    %c0_76 = arith.constant 0 : index
    %c0_77 = arith.constant 0 : index
    %139 = vector.load %arg8[%c1_75, %c0_76, %c0_77] : memref<2x32x32xbf16, #tpu.memory_space<vmem>>, vector<1x32x32xbf16>
    %140 = vector.shape_cast %139 : vector<1x32x32xbf16> to vector<32x32xbf16>
    %cst_78 = arith.constant dense<0.000000e+00> : vector<16x32xf32>
    %141 = tpu.matmul %131, %140, %cst_78 {dimension_numbers = #tpu.dot_dimension_numbers<[1], [0], [0], [1], [0, 0, 1, 1], [], []>} : vector<16x32xbf16>, vector<32x32xbf16>, vector<16x32xf32> -> vector<16x32xf32>
    %c1_79 = arith.constant 1 : index
    %c0_80 = arith.constant 0 : index
    %c0_81 = arith.constant 0 : index
    %142 = vector.load %arg9[%c1_79, %c0_80, %c0_81] : memref<2x1x32xf32, #tpu.memory_space<vmem>>, vector<1x1x32xf32>
    %143 = vector.shape_cast %142 : vector<1x1x32xf32> to vector<1x32xf32>
    %144 = vector.broadcast %143 : vector<1x32xf32> to vector<16x32xf32>
    %145 = arith.addf %141, %144 : vector<16x32xf32>
    %c1_82 = arith.constant 1 : index
    %c0_83 = arith.constant 0 : index
    %c0_84 = arith.constant 0 : index
    %146 = vector.load %arg10[%c1_82, %c0_83, %c0_84] : memref<2x32x32xbf16, #tpu.memory_space<vmem>>, vector<1x32x32xbf16>
    %147 = vector.shape_cast %146 : vector<1x32x32xbf16> to vector<32x32xbf16>
    %cst_85 = arith.constant dense<0.000000e+00> : vector<16x32xf32>
    %148 = tpu.matmul %131, %147, %cst_85 {dimension_numbers = #tpu.dot_dimension_numbers<[1], [0], [0], [1], [0, 0, 1, 1], [], []>} : vector<16x32xbf16>, vector<32x32xbf16>, vector<16x32xf32> -> vector<16x32xf32>
    %c1_86 = arith.constant 1 : index
    %c0_87 = arith.constant 0 : index
    %c0_88 = arith.constant 0 : index
    %149 = vector.load %arg11[%c1_86, %c0_87, %c0_88] : memref<2x1x32xf32, #tpu.memory_space<vmem>>, vector<1x1x32xf32>
    %150 = vector.shape_cast %149 : vector<1x1x32xf32> to vector<1x32xf32>
    %151 = vector.broadcast %150 : vector<1x32xf32> to vector<16x32xf32>
    %152 = arith.addf %148, %151 : vector<16x32xf32>
    %153 = arith.truncf %138 : vector<16x32xf32> to vector<16x32xbf16>
    %154 = vector.shape_cast %153 : vector<16x32xbf16> to vector<2x8x32xbf16>
    %155 = arith.truncf %145 : vector<16x32xf32> to vector<16x32xbf16>
    %156 = vector.shape_cast %155 : vector<16x32xbf16> to vector<2x8x32xbf16>
    %157 = arith.truncf %152 : vector<16x32xf32> to vector<16x32xbf16>
    %158 = vector.shape_cast %157 : vector<16x32xbf16> to vector<2x8x32xbf16>
    %159 = tpu.concatenate %156, %156, %156, %156 in 1 : vector<2x8x32xbf16>, vector<2x8x32xbf16>, vector<2x8x32xbf16>, vector<2x8x32xbf16> -> vector<2x32x32xbf16>
    %160 = vector.shape_cast %31 : vector<32x32xbf16> to vector<1x32x32xbf16>
    %161 = vector.broadcast %160 : vector<1x32x32xbf16> to vector<2x32x32xbf16>
    %162 = arith.mulf %159, %161 : vector<2x32x32xbf16>
    %163 = tpu.concatenate %158, %158, %158, %158 in 1 : vector<2x8x32xbf16>, vector<2x8x32xbf16>, vector<2x8x32xbf16>, vector<2x8x32xbf16> -> vector<2x32x32xbf16>
    %164 = vector.shape_cast %31 : vector<32x32xbf16> to vector<1x32x32xbf16>
    %165 = vector.broadcast %164 : vector<1x32x32xbf16> to vector<2x32x32xbf16>
    %166 = arith.mulf %163, %165 : vector<2x32x32xbf16>
    "tpu.trace_start"() <{level = 10 : i32, message = "bqf,bjf->bqj"}> : () -> ()
    %cst_89 = arith.constant dense<0.000000e+00> : vector<2x8x32xf32>
    %167 = tpu.matmul %154, %162, %cst_89 {dimension_numbers = #tpu.dot_dimension_numbers<[2], [2], [1], [1], [0, 0, 0, 1, 1, 1], [0], [0]>} : vector<2x8x32xbf16>, vector<2x32x32xbf16>, vector<2x8x32xf32> -> vector<2x8x32xf32>
    "tpu.trace_stop"() : () -> ()
    %cst_90 = arith.constant 0.353553385 : f32
    %168 = vector.broadcast %cst_90 : f32 to vector<2x8x32xf32>
    %169 = arith.mulf %167, %168 : vector<2x8x32xf32>
    %cst_91 = arith.constant 0xFF800000 : f32
    %170 = vector.broadcast %cst_91 : f32 to vector<2x8x32xf32>
    %171 = arith.select %6, %169, %170 : vector<2x8x32xi1>, vector<2x8x32xf32>
    %cst_92 = arith.constant 0.000000e+00 : f32
    %172 = vector.shape_cast %10 : vector<2x8x1xi1> to vector<2x8x1xi1>
    %173 = vector.broadcast %172 : vector<2x8x1xi1> to vector<2x8x32xi1>
    %174 = vector.broadcast %cst_92 : f32 to vector<2x8x32xf32>
    %175 = arith.select %173, %171, %174 : vector<2x8x32xi1>, vector<2x8x32xf32>
    %cst_93 = arith.constant dense<0xFF800000> : vector<2x8xf32>
    %176 = vector.multi_reduction <maximumf>, %175, %cst_93 [2] : vector<2x8x32xf32> to vector<2x8xf32>
    %177 = vector.shape_cast %176 : vector<2x8xf32> to vector<2x8x1xf32>
    %178 = vector.broadcast %177 : vector<2x8x1xf32> to vector<2x8x32xf32>
    %179 = arith.subf %175, %178 : vector<2x8x32xf32>
    %180 = math.exp %179 : vector<2x8x32xf32>
    %181 = vector.shape_cast %180 : vector<2x8x32xf32> to vector<16x32xf32>
    %cst_94 = arith.constant dense<0.000000e+00> : vector<16x32xf32>
    %182 = tpu.matmul %181, %32, %cst_94 {dimension_numbers = #tpu.dot_dimension_numbers<[1], [0], [0], [1], [0, 0, 1, 1], [], []>} : vector<16x32xf32>, vector<32x32xf32>, vector<16x32xf32> -> vector<16x32xf32>
    %183 = vector.shape_cast %182 : vector<16x32xf32> to vector<2x8x32xf32>
    %184 = tpu.reciprocal %183 {approx = true} : vector<2x8x32xf32> -> vector<2x8x32xf32>
    %185 = arith.mulf %180, %184 : vector<2x8x32xf32>
    %186 = arith.addf %185, %30 : vector<2x8x32xf32>
    %cst_95 = arith.constant 5.000000e-01 : f32
    %187 = vector.broadcast %cst_95 : f32 to vector<2x8x32xf32>
    %188 = arith.mulf %186, %187 : vector<2x8x32xf32>
    %189 = arith.truncf %188 : vector<2x8x32xf32> to vector<2x8x32xbf16>
    "tpu.trace_start"() <{level = 10 : i32, message = "bqj,bjf->bqf"}> : () -> ()
    %cst_96 = arith.constant dense<0.000000e+00> : vector<2x8x32xf32>
    %190 = tpu.matmul %189, %166, %cst_96 {dimension_numbers = #tpu.dot_dimension_numbers<[2], [1], [1], [2], [0, 0, 0, 1, 1, 2], [0], [0]>} : vector<2x8x32xbf16>, vector<2x32x32xbf16>, vector<2x8x32xf32> -> vector<2x8x32xf32>
    "tpu.trace_stop"() : () -> ()
    %191 = vector.shape_cast %190 : vector<2x8x32xf32> to vector<16x32xf32>
    %192 = arith.truncf %191 : vector<16x32xf32> to vector<16x32xbf16>
    %c1_97 = arith.constant 1 : index
    %c0_98 = arith.constant 0 : index
    %c0_99 = arith.constant 0 : index
    %193 = vector.load %arg12[%c1_97, %c0_98, %c0_99] : memref<2x32x32xbf16, #tpu.memory_space<vmem>>, vector<1x32x32xbf16>
    %194 = vector.shape_cast %193 : vector<1x32x32xbf16> to vector<32x32xbf16>
    %cst_100 = arith.constant dense<0.000000e+00> : vector<16x32xf32>
    %195 = tpu.matmul %192, %194, %cst_100 {dimension_numbers = #tpu.dot_dimension_numbers<[1], [0], [0], [1], [0, 0, 1, 1], [], []>} : vector<16x32xbf16>, vector<32x32xbf16>, vector<16x32xf32> -> vector<16x32xf32>
    %c1_101 = arith.constant 1 : index
    %c0_102 = arith.constant 0 : index
    %c0_103 = arith.constant 0 : index
    %196 = vector.load %arg13[%c1_101, %c0_102, %c0_103] : memref<2x1x32xf32, #tpu.memory_space<vmem>>, vector<1x1x32xf32>
    %197 = vector.shape_cast %196 : vector<1x1x32xf32> to vector<1x32xf32>
    %198 = vector.broadcast %197 : vector<1x32xf32> to vector<16x32xf32>
    %199 = arith.addf %195, %198 : vector<16x32xf32>
    %200 = arith.addf %130, %199 : vector<16x32xf32>
    %cst_104 = arith.constant dense<0.000000e+00> : vector<16xf32>
    %201 = vector.multi_reduction <add>, %200, %cst_104 [1] : vector<16x32xf32> to vector<16xf32>
    %202 = vector.shape_cast %201 : vector<16xf32> to vector<16x1xf32>
    %cst_105 = arith.constant 3.200000e+01 : f32
    %203 = vector.broadcast %cst_105 : f32 to vector<16x1xf32>
    %204 = arith.divf %202, %203 : vector<16x1xf32>
    %205 = vector.broadcast %204 : vector<16x1xf32> to vector<16x32xf32>
    %206 = arith.subf %200, %205 : vector<16x32xf32>
    %207 = arith.mulf %206, %206 : vector<16x32xf32>
    %cst_106 = arith.constant dense<0.000000e+00> : vector<16xf32>
    %208 = vector.multi_reduction <add>, %207, %cst_106 [1] : vector<16x32xf32> to vector<16xf32>
    %209 = vector.shape_cast %208 : vector<16xf32> to vector<16x1xf32>
    %cst_107 = arith.constant 3.200000e+01 : f32
    %210 = vector.broadcast %cst_107 : f32 to vector<16x1xf32>
    %211 = arith.divf %209, %210 : vector<16x1xf32>
    %212 = vector.broadcast %204 : vector<16x1xf32> to vector<16x32xf32>
    %213 = arith.subf %200, %212 : vector<16x32xf32>
    %cst_108 = arith.constant 9.99999974E-6 : f32
    %214 = vector.broadcast %cst_108 : f32 to vector<16x1xf32>
    %215 = arith.addf %211, %214 : vector<16x1xf32>
    %216 = math.rsqrt %215 : vector<16x1xf32>
    %217 = vector.broadcast %216 : vector<16x1xf32> to vector<16x32xf32>
    %218 = arith.mulf %213, %217 : vector<16x32xf32>
    %c1_109 = arith.constant 1 : index
    %c0_110 = arith.constant 0 : index
    %c0_111 = arith.constant 0 : index
    %219 = vector.load %arg14[%c1_109, %c0_110, %c0_111] : memref<2x1x32xf32, #tpu.memory_space<vmem>>, vector<1x1x32xf32>
    %220 = vector.shape_cast %219 : vector<1x1x32xf32> to vector<1x32xf32>
    %221 = vector.broadcast %220 : vector<1x32xf32> to vector<16x32xf32>
    %222 = arith.mulf %218, %221 : vector<16x32xf32>
    %c1_112 = arith.constant 1 : index
    %c0_113 = arith.constant 0 : index
    %c0_114 = arith.constant 0 : index
    %223 = vector.load %arg15[%c1_112, %c0_113, %c0_114] : memref<2x1x32xf32, #tpu.memory_space<vmem>>, vector<1x1x32xf32>
    %224 = vector.shape_cast %223 : vector<1x1x32xf32> to vector<1x32xf32>
    %225 = vector.broadcast %224 : vector<1x32xf32> to vector<16x32xf32>
    %226 = arith.addf %222, %225 : vector<16x32xf32>
    %227 = vector.shape_cast %226 : vector<16x32xf32> to vector<2x8x32xf32>
    %228 = vector.extract_strided_slice %227 {offsets = [0, 0, 0], sizes = [2, 1, 32], strides = [1, 1, 1]} : vector<2x8x32xf32> to vector<2x1x32xf32>
    %229 = vector.shape_cast %228 : vector<2x1x32xf32> to vector<2x32xf32>
    %cst_115 = arith.constant dense<0.000000e+00> : vector<2xf32>
    %230 = vector.multi_reduction <add>, %229, %cst_115 [1] : vector<2x32xf32> to vector<2xf32>
    %231 = vector.shape_cast %230 : vector<2xf32> to vector<2x1xf32>
    %cst_116 = arith.constant 3.200000e+01 : f32
    %232 = vector.broadcast %cst_116 : f32 to vector<2x1xf32>
    %233 = arith.divf %231, %232 : vector<2x1xf32>
    %234 = vector.broadcast %233 : vector<2x1xf32> to vector<2x32xf32>
    %235 = arith.subf %229, %234 : vector<2x32xf32>
    %236 = arith.mulf %235, %235 : vector<2x32xf32>
    %cst_117 = arith.constant dense<0.000000e+00> : vector<2xf32>
    %237 = vector.multi_reduction <add>, %236, %cst_117 [1] : vector<2x32xf32> to vector<2xf32>
    %238 = vector.shape_cast %237 : vector<2xf32> to vector<2x1xf32>
    %cst_118 = arith.constant 3.200000e+01 : f32
    %239 = vector.broadcast %cst_118 : f32 to vector<2x1xf32>
    %240 = arith.divf %238, %239 : vector<2x1xf32>
    %241 = vector.broadcast %233 : vector<2x1xf32> to vector<2x32xf32>
    %242 = arith.subf %229, %241 : vector<2x32xf32>
    %cst_119 = arith.constant 9.99999974E-6 : f32
    %243 = vector.broadcast %cst_119 : f32 to vector<2x1xf32>
    %244 = arith.addf %240, %243 : vector<2x1xf32>
    %245 = math.rsqrt %244 : vector<2x1xf32>
    %246 = vector.broadcast %245 : vector<2x1xf32> to vector<2x32xf32>
    %247 = arith.mulf %242, %246 : vector<2x32xf32>
    %c0_120 = arith.constant 0 : index
    %c0_121 = arith.constant 0 : index
    %248 = vector.load %arg16[%c0_120, %c0_121] : memref<1x32xf32, #tpu.memory_space<vmem>>, vector<1x32xf32>
    %249 = vector.broadcast %248 : vector<1x32xf32> to vector<2x32xf32>
    %250 = arith.mulf %247, %249 : vector<2x32xf32>
    %c0_122 = arith.constant 0 : index
    %c0_123 = arith.constant 0 : index
    %251 = vector.load %arg17[%c0_122, %c0_123] : memref<1x32xf32, #tpu.memory_space<vmem>>, vector<1x32xf32>
    %252 = vector.broadcast %251 : vector<1x32xf32> to vector<2x32xf32>
    %253 = arith.addf %250, %252 : vector<2x32xf32>
    %c0_124 = arith.constant 0 : index
    %c0_125 = arith.constant 0 : index
    %254 = vector.load %arg18[%c0_124, %c0_125] : memref<2x32xf32, #tpu.memory_space<vmem>>, vector<2x32xf32>
    tpu.vector_store %arg18[%c0_124, %c0_125], %253 {strides = array<i32>} : memref<2x32xf32, #tpu.memory_space<vmem>>, vector<2x32xf32>,
    return
  }
}

</mosaic_0001>

<llo_original>
// kernel: tpu_custom_call.1
$region0: #{tpu_custom_call.1}
  #allocation0 [shape = 'u32[]', space=smem, size = 0x4, offset = 0x4, fixed_abs, tag = 'smem constant byte address 0x4 - core index']
  #allocation1 [shape = 'u32[144,128]{1,0:T(1,128)}', space=vmem, size = 0x12000, scoped, tag = 'internal scratch']
  %s0 = inlined_call_operand.hbm [shape: f32[2,8,32], index: 0, kind: input, shape index: {}]
  %s1 = inlined_call_operand.vmem [shape: f32[2,8,1], index: 1, kind: input, shape index: {}]
  %s2 = inlined_call_operand.vmem [shape: f32[2,1,32], index: 2, kind: input, shape index: {}]
  %s3 = inlined_call_operand.hbm [shape: f32[2,8,32], index: 3, kind: input, shape index: {}]
  %s4 = inlined_call_operand.hbm [shape: bf16[32,32], index: 4, kind: input, shape index: {}]
  %s5 = inlined_call_operand.vmem [shape: f32[32,32], index: 5, kind: input, shape index: {}]
  %s6 = inlined_call_operand.hbm [shape: bf16[2,32,32], index: 6, kind: input, shape index: {}]
  %s7 = inlined_call_operand.vmem [shape: f32[2,1,32], index: 7, kind: input, shape index: {}]
  %s8 = inlined_call_operand.hbm [shape: bf16[2,32,32], index: 8, kind: input, shape index: {}]
  %s9 = inlined_call_operand.vmem [shape: f32[2,1,32], index: 9, kind: input, shape index: {}]
  %s10 = inlined_call_operand.hbm [shape: bf16[2,32,32], index: 10, kind: input, shape index: {}]
  %s11 = inlined_call_operand.vmem [shape: f32[2,1,32], index: 11, kind: input, shape index: {}]
  %s12 = inlined_call_operand.hbm [shape: bf16[2,32,32], index: 12, kind: input, shape index: {}]
  %s13 = inlined_call_operand.vmem [shape: f32[2,1,32], index: 13, kind: input, shape index: {}]
  %s14 = inlined_call_operand.vmem [shape: f32[2,1,32], index: 14, kind: input, shape index: {}]
  %s15 = inlined_call_operand.vmem [shape: f32[2,1,32], index: 15, kind: input, shape index: {}]
  %s16 = inlined_call_operand.vmem [shape: f32[1,32], index: 16, kind: input, shape index: {}]
  %s17 = inlined_call_operand.vmem [shape: f32[1,32], index: 17, kind: input, shape index: {}]
  %s18 = inlined_call_operand.hbm [shape: f32[2,32], index: 18, kind: output, shape index: {}]
  %s19 = sld [smem:[#allocation0]]
  $region110: #{tpu_custom_call.1} parent=0
    _
  %s21 = ssub.s32 1, %s19
  %s22 = scalar_select 0, %s21, %s19
  $region1: #{tpu_custom_call.1} parent=0
    #allocation2 [shape = 'u8[8192]{0}', space=vmem, size = 0x2000, scoped, tag = 'input window, operand 0, single buffered']
    #allocation3 [shape = 's32[1]{0}', space=sflag, size = 0x4, scoped, tag = 'scoped memory for tpu_custom_call.1']
    #allocation4 [shape = 's32[1]{0}', space=sflag, size = 0x4, scoped, tag = 'scoped memory for tpu_custom_call.1']
    #allocation5 [shape = 'u8[8192]{0}', space=vmem, size = 0x2000, scoped, tag = 'input window, operand 3, single buffered']
    #allocation6 [shape = 's32[1]{0}', space=sflag, size = 0x4, scoped, tag = 'scoped memory for tpu_custom_call.1']
    #allocation7 [shape = 'u8[8192]{0}', space=vmem, size = 0x2000, scoped, tag = 'input window, operand 4, single buffered']
    #allocation8 [shape = 'u8[16384]{0}', space=vmem, size = 0x4000, scoped, tag = 'input window, operand 6, single buffered']
    #allocation9 [shape = 's32[1]{0}', space=sflag, size = 0x4, scoped, tag = 'scoped memory for tpu_custom_call.1']
    #allocation10 [shape = 'u8[16384]{0}', space=vmem, size = 0x4000, scoped, tag = 'input window, operand 8, single buffered']
    #allocation11 [shape = 'u8[16384]{0}', space=vmem, size = 0x4000, scoped, tag = 'input window, operand 10, single buffered']
    #allocation12 [shape = 's32[1]{0}', space=sflag, size = 0x4, scoped, tag = 'scoped memory for tpu_custom_call.1']
    #allocation13 [shape = 'u8[16384]{0}', space=vmem, size = 0x4000, scoped, tag = 'input window, operand 12, single buffered']
    #allocation14 [shape = 'u8[1024]{0}', space=vmem, size = 0x400, scoped, tag = 'output window, operand 0, single buffered']
    %23 = vsyncpa [#allocation3], 0
    %24 = vsyncpa [#allocation6], 0
    %25 = vsyncpa [#allocation9], 0
    %26 = vsyncpa [#allocation12], 0
    %27 = vsyncpa [#allocation4], 0
    // Predicated region
    $region2: #{tpu_custom_call.1} parent=1 // pred_check
      _
    $region3: #{tpu_custom_call.1} parent=1 // pred_check_branch
      %29 = sbr.rel (0) target = $region5
    $region4: #{tpu_custom_call.1} parent=1 // pred_region
      %s31 = ssub.s32 256, 256
      %32 = vsyncadd [#allocation3], %s31
      %s33 = sshll.u32 [#allocation2], 4
      %s34 = int_to_ptr.vmem [resolvable:$true] %s33
      %39 = dma.hbm_to_vmem [thread:$0]  %s0, 256, %s34, [#allocation3], 128, 128, 8
    $region5: #{tpu_custom_call.1} parent=1 // pred_fallthru
      _
    // Predicated region
    $region6: #{tpu_custom_call.1} parent=1 // pred_check
      _
    $region7: #{tpu_custom_call.1} parent=1 // pred_check_branch
      %41 = sbr.rel (0) target = $region9
    $region8: #{tpu_custom_call.1} parent=1 // pred_region
      _
    $region9: #{tpu_custom_call.1} parent=1 // pred_fallthru
      _
    // Predicated region
    $region10: #{tpu_custom_call.1} parent=1 // pred_check
      _
    $region11: #{tpu_custom_call.1} parent=1 // pred_check_branch
      %43 = sbr.rel (0) target = $region13
    $region12: #{tpu_custom_call.1} parent=1 // pred_region
      _
    $region13: #{tpu_custom_call.1} parent=1 // pred_fallthru
      _
    // Predicated region
    $region14: #{tpu_custom_call.1} parent=1 // pred_check
      _
    $region15: #{tpu_custom_call.1} parent=1 // pred_check_branch
      %45 = sbr.rel (0) target = $region17
    $region16: #{tpu_custom_call.1} parent=1 // pred_region
      %s47 = ssub.s32 256, 256
      %48 = vsyncadd [#allocation6], %s47
      %s49 = sshll.u32 [#allocation5], 4
      %s50 = int_to_ptr.vmem [resolvable:$true] %s49
      %55 = dma.hbm_to_vmem [thread:$0]  %s3, 256, %s50, [#allocation6], 128, 128, 8
    $region17: #{tpu_custom_call.1} parent=1 // pred_fallthru
      _
    // Predicated region
    $region18: #{tpu_custom_call.1} parent=1 // pred_check
      _
    $region19: #{tpu_custom_call.1} parent=1 // pred_check_branch
      %57 = sbr.rel (0) target = $region21
    $region20: #{tpu_custom_call.1} parent=1 // pred_region
      %s59 = ssub.s32 256, 256
      %60 = vsyncadd [#allocation6], %s59
      %s61 = sshll.u32 [#allocation7], 4
      %s62 = int_to_ptr.vmem [resolvable:$true] %s61
      %67 = dma.hbm_to_vmem [thread:$0]  %s4, 256, %s62, [#allocation6], 64, 64, 4
    $region21: #{tpu_custom_call.1} parent=1 // pred_fallthru
      _
    // Predicated region
    $region22: #{tpu_custom_call.1} parent=1 // pred_check
      _
    $region23: #{tpu_custom_call.1} parent=1 // pred_check_branch
      %69 = sbr.rel (0) target = $region25
    $region24: #{tpu_custom_call.1} parent=1 // pred_region
      _
    $region25: #{tpu_custom_call.1} parent=1 // pred_fallthru
      _
    // Predicated region
    $region26: #{tpu_custom_call.1} parent=1 // pred_check
      _
    $region27: #{tpu_custom_call.1} parent=1 // pred_check_branch
      %71 = sbr.rel (0) target = $region29
    $region28: #{tpu_custom_call.1} parent=1 // pred_region
      %s73 = ssub.s32 512, 512
      %74 = vsyncadd [#allocation9], %s73
      %s75 = sshll.u32 [#allocation8], 4
      %s76 = int_to_ptr.vmem [resolvable:$true] %s75
      %81 = dma.hbm_to_vmem [thread:$0]  %s6, 512, %s76, [#allocation9], 64, 64, 4
    $region29: #{tpu_custom_call.1} parent=1 // pred_fallthru
      _
    // Predicated region
    $region30: #{tpu_custom_call.1} parent=1 // pred_check
      _
    $region31: #{tpu_custom_call.1} parent=1 // pred_check_branch
      %83 = sbr.rel (0) target = $region33
    $region32: #{tpu_custom_call.1} parent=1 // pred_region
      _
    $region33: #{tpu_custom_call.1} parent=1 // pred_fallthru
      _
    // Predicated region
    $region34: #{tpu_custom_call.1} parent=1 // pred_check
      _
    $region35: #{tpu_custom_call.1} parent=1 // pred_check_branch
      %85 = sbr.rel (0) target = $region37
    $region36: #{tpu_custom_call.1} parent=1 // pred_region
      %s87 = ssub.s32 512, 512
      %88 = vsyncadd [#allocation9], %s87
      %s89 = sshll.u32 [#allocation10], 4
      %s90 = int_to_ptr.vmem [resolvable:$true] %s89
      %95 = dma.hbm_to_vmem [thread:$0]  %s8, 512, %s90, [#allocation9], 64, 64, 4
    $region37: #{tpu_custom_call.1} parent=1 // pred_fallthru
      _
    // Predicated region
    $region38: #{tpu_custom_call.1} parent=1 // pred_check
      _
    $region39: #{tpu_custom_call.1} parent=1 // pred_check_branch
      %97 = sbr.rel (0) target = $region41
    $region40: #{tpu_custom_call.1} parent=1 // pred_region
      _
    $region41: #{tpu_custom_call.1} parent=1 // pred_fallthru
      _
    // Predicated region
    $region42: #{tpu_custom_call.1} parent=1 // pred_check
      _
    $region43: #{tpu_custom_call.1} parent=1 // pred_check_branch
      %99 = sbr.rel (0) target = $region45
    $region44: #{tpu_custom_call.1} parent=1 // pred_region
      %s101 = ssub.s32 512, 512
      %102 = vsyncadd [#allocation12], %s101
      %s103 = sshll.u32 [#allocation11], 4
      %s104 = int_to_ptr.vmem [resolvable:$true] %s103
      %109 = dma.hbm_to_vmem [thread:$0]  %s10, 512, %s104, [#allocation12], 64, 64, 4
    $region45: #{tpu_custom_call.1} parent=1 // pred_fallthru
      _
    // Predicated region
    $region46: #{tpu_custom_call.1} parent=1 // pred_check
      _
    $region47: #{tpu_custom_call.1} parent=1 // pred_check_branch
      %111 = sbr.rel (0) target = $region49
    $region48: #{tpu_custom_call.1} parent=1 // pred_region
      _
    $region49: #{tpu_custom_call.1} parent=1 // pred_fallthru
      _
    // Predicated region
    $region50: #{tpu_custom_call.1} parent=1 // pred_check
      _
    $region51: #{tpu_custom_call.1} parent=1 // pred_check_branch
      %113 = sbr.rel (0) target = $region53
    $region52: #{tpu_custom_call.1} parent=1 // pred_region
      %s115 = ssub.s32 512, 512
      %116 = vsyncadd [#allocation12], %s115
      %s117 = sshll.u32 [#allocation13], 4
      %s118 = int_to_ptr.vmem [resolvable:$true] %s117
      %123 = dma.hbm_to_vmem [thread:$0]  %s12, 512, %s118, [#allocation12], 64, 64, 4
    $region53: #{tpu_custom_call.1} parent=1 // pred_fallthru
      _
    // Predicated region
    $region54: #{tpu_custom_call.1} parent=1 // pred_check
      _
    $region55: #{tpu_custom_call.1} parent=1 // pred_check_branch
      %125 = sbr.rel (0) target = $region57
    $region56: #{tpu_custom_call.1} parent=1 // pred_region
      _
    $region57: #{tpu_custom_call.1} parent=1 // pred_fallthru
      _
    // Predicated region
    $region58: #{tpu_custom_call.1} parent=1 // pred_check
      _
    $region59: #{tpu_custom_call.1} parent=1 // pred_check_branch
      %127 = sbr.rel (0) target = $region61
    $region60: #{tpu_custom_call.1} parent=1 // pred_region
      _
    $region61: #{tpu_custom_call.1} parent=1 // pred_fallthru
      _
    // Predicated region
    $region62: #{tpu_custom_call.1} parent=1 // pred_check
      _
    $region63: #{tpu_custom_call.1} parent=1 // pred_check_branch
      %129 = sbr.rel (0) target = $region65
    $region64: #{tpu_custom_call.1} parent=1 // pred_region
      _
    $region65: #{tpu_custom_call.1} parent=1 // pred_fallthru
      _
    // Predicated region
    $region66: #{tpu_custom_call.1} parent=1 // pred_check
      _
    $region67: #{tpu_custom_call.1} parent=1 // pred_check_branch
      %131 = sbr.rel (0) target = $region69
    $region68: #{tpu_custom_call.1} parent=1 // pred_region
      _
    $region69: #{tpu_custom_call.1} parent=1 // pred_fallthru
      _
    // Predicated region
    $region70: #{tpu_custom_call.1} parent=1 // pred_check
      _
    $region71: #{tpu_custom_call.1} parent=1 // pred_check_branch
      %133 = sbr.rel (0) target = $region73
    $region72: #{tpu_custom_call.1} parent=1 // pred_region
      _
    $region73: #{tpu_custom_call.1} parent=1 // pred_fallthru
      _
    // Predicated region
    $region74: #{tpu_custom_call.1} parent=1 // pred_check
      _
    $region75: #{tpu_custom_call.1} parent=1 // pred_check_branch
      %135 = sbr.rel (0) target = $region77
    $region76: #{tpu_custom_call.1} parent=1 // pred_region
      %136 = dma.done [#allocation3], 256
    $region77: #{tpu_custom_call.1} parent=1 // pred_fallthru
      _
    // Predicated region
    $region78: #{tpu_custom_call.1} parent=1 // pred_check
      _
    $region79: #{tpu_custom_call.1} parent=1 // pred_check_branch
      %138 = sbr.rel (0) target = $region81
    $region80: #{tpu_custom_call.1} parent=1 // pred_region
      %139 = dma.done [#allocation6], 256
    $region81: #{tpu_custom_call.1} parent=1 // pred_fallthru
      _
    // Predicated region
    $region82: #{tpu_custom_call.1} parent=1 // pred_check
      _
    $region83: #{tpu_custom_call.1} parent=1 // pred_check_branch
      %141 = sbr.rel (0) target = $region85
    $region84: #{tpu_custom_call.1} parent=1 // pred_region
      %142 = dma.done [#allocation6], 256
    $region85: #{tpu_custom_call.1} parent=1 // pred_fallthru
      _
    // Predicated region
    $region86: #{tpu_custom_call.1} parent=1 // pred_check
      _
    $region87: #{tpu_custom_call.1} parent=1 // pred_check_branch
      %144 = sbr.rel (0) target = $region89
    $region88: #{tpu_custom_call.1} parent=1 // pred_region
      %145 = dma.done [#allocation9], 512
    $region89: #{tpu_custom_call.1} parent=1 // pred_fallthru
      _
    // Predicated region
    $region90: #{tpu_custom_call.1} parent=1 // pred_check
      _
    $region91: #{tpu_custom_call.1} parent=1 // pred_check_branch
      %147 = sbr.rel (0) target = $region93
    $region92: #{tpu_custom_call.1} parent=1 // pred_region
      %148 = dma.done [#allocation9], 512
    $region93: #{tpu_custom_call.1} parent=1 // pred_fallthru
      _
    // Predicated region
    $region94: #{tpu_custom_call.1} parent=1 // pred_check
      _
    $region95: #{tpu_custom_call.1} parent=1 // pred_check_branch
      %150 = sbr.rel (0) target = $region97
    $region96: #{tpu_custom_call.1} parent=1 // pred_region
      %151 = dma.done [#allocation12], 512
    $region97: #{tpu_custom_call.1} parent=1 // pred_fallthru
      _
    // Predicated region
    $region98: #{tpu_custom_call.1} parent=1 // pred_check
      _
    $region99: #{tpu_custom_call.1} parent=1 // pred_check_branch
      %153 = sbr.rel (0) target = $region101
    $region100: #{tpu_custom_call.1} parent=1 // pred_region
      %154 = dma.done [#allocation12], 512
    $region101: #{tpu_custom_call.1} parent=1 // pred_fallthru
      _
    %v156 = vld [vmem:[%s1] sm:$0xff]
    %v157 = vld [vmem:[%s1 + $0x8] sm:$0xff]
    %v158 = vld [vmem:[%s2] sm:$0x1]
    %v159 = vld [vmem:[%s2 + $0x1] sm:$0x1]
    %161 = vset.pattern.permute.xlu0 0
    %162 = vperm.xlu0 %161, %v156
    %v163 = vpop.permute.xlu0 %162
    %166 = vset.pattern.permute.xlu0 0
    %167 = vperm.xlu0 %166, %v157
    %v168 = vpop.permute.xlu0 %167
    %v172 = vlaneseq
    %v173 = vshrl.u32 %v172, 7
    %v174 = vsub.s32 0, %v173
    %v175 = vrot.slane %v158, %v174
    %v176 = vlaneseq
    %v177 = vshrl.u32 %v176, 7
    %v178 = vsub.s32 0, %v177
    %v179 = vrot.slane %v159, %v178
    %v182 = vmul.f32 %v163, %v175
    %v183 = vmul.f32 %v168, %v179
    %vm184 = vcmp.gt.f32.partialorder %v182, 0.5
    %vm185 = vcmp.gt.f32.partialorder %v183, 0.5
    %vm186 = vcmask 261120
    %v187 = vsel %vm186, %v182, -inf
    %188 = vmax.xlane.f32.xlu0 %v187
    %v189 = vpop.xlane.xlu0 %188
    %v190 = vsel %vm186, %v183, -inf
    %191 = vmax.xlane.f32.xlu0 %v190
    %v192 = vpop.xlane.xlu0 %191
    %vm193 = vcmp.gt.f32.partialorder %v189, 0.5
    %vm194 = vcmp.gt.f32.partialorder %v192, 0.5
    %v195 = vld [vmem:[#allocation5] sm:$0xff]
    %v196 = vld [vmem:[#allocation5 + $0x8] sm:$0xff]
    %v197 = vand.u32 2147483647, %v195
    %v198 = vand.u32 2147483647, %v196
    %v199 = vsel %vm184, %v197, -inf
    %v200 = vsel %vm185, %v198, -inf
    %v201 = vsel %vm193, 1, 0
    %v202 = vsel %vm194, 1, 0
    %vm203 = vcmp.eq.s32.totalorder %v201, 1
    %vm204 = vcmp.eq.s32.totalorder %v202, 1
    %v205 = vsel %vm203, %v199, 0.0
    %v206 = vsel %vm204, %v200, 0.0
    %v207 = vsel %vm186, %v205, -inf
    %208 = vmax.xlane.f32.xlu0 %v207
    %v209 = vpop.xlane.xlu0 %208
    %v210 = vsel %vm186, %v206, -inf
    %211 = vmax.xlane.f32.xlu0 %v210
    %v212 = vpop.xlane.xlu0 %211
    %v213 = vsub.f32 %v205, %v209
    %v214 = vsub.f32 %v206, %v212
    %v215 = vmul.f32 %v213, 1.442695
    %v216 = vpow.pop %v215
    %v217 = vmul.f32 %v214, 1.442695
    %v218 = vpow.pop %v217
    %v219 = vsel %vm186, %v216, 0.0
    %220 = vadd.xlane.f32.xlu0 %v219
    %v221 = vpop.xlane.xlu0 %220
    %v222 = vsel %vm186, %v218, 0.0
    %223 = vadd.xlane.f32.xlu0 %v222
    %v224 = vpop.xlane.xlu0 %223
    %v225 = vrcp.pop %v221
    %v226 = vrcp.pop %v224
    %v227 = vmul.f32 %v225, 4.0
    %v228 = vmul.f32 %v226, 4.0
    %v229 = vmul.f32 %v216, %v227
    %v230 = vmul.f32 %v218, %v228
    %v231 = vld [vmem:[#allocation7] sm:$0xf]
    %v232 = vld [vmem:[#allocation7 + $0x4] sm:$0xf]
    %v233 = vld [vmem:[#allocation7 + $0x8] sm:$0xf]
    %v234 = vld [vmem:[#allocation7 + $0xc] sm:$0xf]
    %v235 = vld [vmem:[%s5] sm:$0xff]
    %v236 = vld [vmem:[%s5 + $0x8] sm:$0xff]
    %v237 = vld [vmem:[%s5 + $0x10] sm:$0xff]
    %v238 = vld [vmem:[%s5 + $0x18] sm:$0xff]
    %v239 = vld [vmem:[#allocation2] sm:$0xff]
    %v240 = vld [vmem:[#allocation2 + $0x8] sm:$0xff]
    %v241 = vpack.c.bf16 %v240, %v239
    %v242 = vld [vmem:[#allocation8] sm:$0xf]
    %v243 = vld [vmem:[#allocation8 + $0x4] sm:$0xf]
    %v244 = vld [vmem:[#allocation8 + $0x8] sm:$0xf]
    %v245 = vld [vmem:[#allocation8 + $0xc] sm:$0xf]
    %v246 = vld [vmem:[%s7] sm:$0x1]
    %v248 = vlaneseq
    %v249 = vshrl.u32 %v248, 7
    %v250 = vsub.s32 0, %v249
    %v251 = vrot.slane %v246, %v250
    %v257 = vunpack.c.l.b16 %v242
    %v258 = vunpack.c.l.b16 %v243
    %v259 = vunpack.c.l.b16 %v244
    %v260 = vunpack.c.l.b16 %v245
    %v261 = vpack.c.b16 %v258, %v257
    %v262 = vpack.c.b16 %v260, %v259
    %v266 = vsel %vm186, %v241, 0
    %268 = vmatprep.subr.bf16.mxu0 0
    %269 = vmatpush1.bf16.msra.mxu0 %v261
    %270 = vmatprep.subr.bf16.mxu0 0
    %271 = vmatpush1.bf16.msra.mxu0 %v262
    %272 = vmatprep.subr.bf16.mxu0 0
    %273 = vmatpush1.bf16.msra.mxu0 0
    %274 = vmatprep.subr.bf16.mxu0 0
    %275 = vmatpush1.bf16.msra.mxu0 0
    %276 = vmatprep.subr.bf16.mxu0 0
    %277 = vmatpush1.bf16.msra.mxu0 0
    %278 = vmatprep.subr.bf16.mxu0 0
    %279 = vmatpush1.bf16.msra.mxu0 0
    %280 = vmatprep.subr.bf16.mxu0 0
    %281 = vmatpush1.bf16.msra.mxu0 0
    %282 = vmatprep.subr.bf16.mxu0 0
    %283 = vmatpush1.bf16.msra.mxu0 0
    %284 = vmatprep.subr.bf16.mxu0 0
    %285 = vmatpush1.bf16.msra.mxu0 0
    %286 = vmatprep.subr.bf16.mxu0 0
    %287 = vmatpush1.bf16.msra.mxu0 0
    %288 = vmatprep.subr.bf16.mxu0 0
    %289 = vmatpush1.bf16.msra.mxu0 0
    %290 = vmatprep.subr.bf16.mxu0 0
    %291 = vmatpush1.bf16.msra.mxu0 0
    %292 = vmatprep.subr.bf16.mxu0 0
    %293 = vmatpush1.bf16.msra.mxu0 0
    %294 = vmatprep.subr.bf16.mxu0 0
    %295 = vmatpush1.bf16.msra.mxu0 0
    %296 = vmatprep.subr.bf16.mxu0 0
    %297 = vmatpush1.bf16.msra.mxu0 0
    %298 = vmatprep.subr.bf16.mxu0 0
    %299 = vmatpush1.bf16.msra.mxu0 0
    %300 = vmatprep.mubr.bf16.mxu0 0
    %301 = vmatmul.mubr.bf16.gmra.mrb[0].mxu0 %v266
    %v302 = vpop.f32.mrb[0].mxu0
    %v303 = vadd.f32 %v251, %v302
    %v304 = vpop.f32.mrb[0].mxu0
    %v305 = vpop.f32.mrb[0].mxu0
    %v306 = vadd.f32 %v251, %v305
    %v307 = vpop.f32.mrb[0].mxu0
    %308 = vdwg.mxu0
    %v309 = vld [vmem:[#allocation10] sm:$0xf]
    %v310 = vld [vmem:[#allocation10 + $0x4] sm:$0xf]
    %v311 = vld [vmem:[#allocation10 + $0x8] sm:$0xf]
    %v312 = vld [vmem:[#allocation10 + $0xc] sm:$0xf]
    %v313 = vld [vmem:[%s9] sm:$0x1]
    %v315 = vlaneseq
    %v316 = vshrl.u32 %v315, 7
    %v317 = vsub.s32 0, %v316
    %v318 = vrot.slane %v313, %v317
    %v324 = vunpack.c.l.b16 %v309
    %v325 = vunpack.c.l.b16 %v310
    %v326 = vunpack.c.l.b16 %v311
    %v327 = vunpack.c.l.b16 %v312
    %v328 = vpack.c.b16 %v325, %v324
    %v329 = vpack.c.b16 %v327, %v326
    %332 = vmatprep.subr.bf16.mxu0 0
    %333 = vmatpush1.bf16.msra.mxu0 %v328
    %334 = vmatprep.subr.bf16.mxu0 0
    %335 = vmatpush1.bf16.msra.mxu0 %v329
    %336 = vmatprep.subr.bf16.mxu0 0
    %337 = vmatpush1.bf16.msra.mxu0 0
    %338 = vmatprep.subr.bf16.mxu0 0
    %339 = vmatpush1.bf16.msra.mxu0 0
    %340 = vmatprep.subr.bf16.mxu0 0
    %341 = vmatpush1.bf16.msra.mxu0 0
    %342 = vmatprep.subr.bf16.mxu0 0
    %343 = vmatpush1.bf16.msra.mxu0 0
    %344 = vmatprep.subr.bf16.mxu0 0
    %345 = vmatpush1.bf16.msra.mxu0 0
    %346 = vmatprep.subr.bf16.mxu0 0
    %347 = vmatpush1.bf16.msra.mxu0 0
    %348 = vmatprep.subr.bf16.mxu0 0
    %349 = vmatpush1.bf16.msra.mxu0 0
    %350 = vmatprep.subr.bf16.mxu0 0
    %351 = vmatpush1.bf16.msra.mxu0 0
    %352 = vmatprep.subr.bf16.mxu0 0
    %353 = vmatpush1.bf16.msra.mxu0 0
    %354 = vmatprep.subr.bf16.mxu0 0
    %355 = vmatpush1.bf16.msra.mxu0 0
    %356 = vmatprep.subr.bf16.mxu0 0
    %357 = vmatpush1.bf16.msra.mxu0 0
    %358 = vmatprep.subr.bf16.mxu0 0
    %359 = vmatpush1.bf16.msra.mxu0 0
    %360 = vmatprep.subr.bf16.mxu0 0
    %361 = vmatpush1.bf16.msra.mxu0 0
    %362 = vmatprep.subr.bf16.mxu0 0
    %363 = vmatpush1.bf16.msra.mxu0 0
    %364 = vmatprep.mubr.bf16.mxu0 0
    %365 = vmatmul.mubr.bf16.gmra.mrb[0].mxu0 %v266
    %v366 = vpop.f32.mrb[0].mxu0
    %v367 = vadd.f32 %v318, %v366
    %v368 = vpop.f32.mrb[0].mxu0
    %v369 = vpop.f32.mrb[0].mxu0
    %v370 = vadd.f32 %v318, %v369
    %v371 = vpop.f32.mrb[0].mxu0
    %372 = vdwg.mxu0
    %v373 = vld [vmem:[#allocation11] sm:$0xf]
    %v374 = vld [vmem:[#allocation11 + $0x4] sm:$0xf]
    %v375 = vld [vmem:[#allocation11 + $0x8] sm:$0xf]
    %v376 = vld [vmem:[#allocation11 + $0xc] sm:$0xf]
    %v377 = vld [vmem:[%s11] sm:$0x1]
    %v379 = vlaneseq
    %v380 = vshrl.u32 %v379, 7
    %v381 = vsub.s32 0, %v380
    %v382 = vrot.slane %v377, %v381
    %v388 = vunpack.c.l.b16 %v373
    %v389 = vunpack.c.l.b16 %v374
    %v390 = vunpack.c.l.b16 %v375
    %v391 = vunpack.c.l.b16 %v376
    %v392 = vpack.c.b16 %v389, %v388
    %v393 = vpack.c.b16 %v391, %v390
    %396 = vmatprep.subr.bf16.mxu0 0
    %397 = vmatpush1.bf16.msra.mxu0 %v392
    %398 = vmatprep.subr.bf16.mxu0 0
    %399 = vmatpush1.bf16.msra.mxu0 %v393
    %400 = vmatprep.subr.bf16.mxu0 0
    %401 = vmatpush1.bf16.msra.mxu0 0
    %402 = vmatprep.subr.bf16.mxu0 0
    %403 = vmatpush1.bf16.msra.mxu0 0
    %404 = vmatprep.subr.bf16.mxu0 0
    %405 = vmatpush1.bf16.msra.mxu0 0
    %406 = vmatprep.subr.bf16.mxu0 0
    %407 = vmatpush1.bf16.msra.mxu0 0
    %408 = vmatprep.subr.bf16.mxu0 0
    %409 = vmatpush1.bf16.msra.mxu0 0
    %410 = vmatprep.subr.bf16.mxu0 0
    %411 = vmatpush1.bf16.msra.mxu0 0
    %412 = vmatprep.subr.bf16.mxu0 0
    %413 = vmatpush1.bf16.msra.mxu0 0
    %414 = vmatprep.subr.bf16.mxu0 0
    %415 = vmatpush1.bf16.msra.mxu0 0
    %416 = vmatprep.subr.bf16.mxu0 0
    %417 = vmatpush1.bf16.msra.mxu0 0
    %418 = vmatprep.subr.bf16.mxu0 0
    %419 = vmatpush1.bf16.msra.mxu0 0
    %420 = vmatprep.subr.bf16.mxu0 0
    %421 = vmatpush1.bf16.msra.mxu0 0
    %422 = vmatprep.subr.bf16.mxu0 0
    %423 = vmatpush1.bf16.msra.mxu0 0
    %424 = vmatprep.subr.bf16.mxu0 0
    %425 = vmatpush1.bf16.msra.mxu0 0
    %426 = vmatprep.subr.bf16.mxu0 0
    %427 = vmatpush1.bf16.msra.mxu0 0
    %428 = vmatprep.mubr.bf16.mxu0 0
    %429 = vmatmul.mubr.bf16.gmra.mrb[0].mxu0 %v266
    %v430 = vpop.f32.mrb[0].mxu0
    %v431 = vadd.f32 %v382, %v430
    %v432 = vpop.f32.mrb[0].mxu0
    %v433 = vpop.f32.mrb[0].mxu0
    %v434 = vadd.f32 %v382, %v433
    %v435 = vpop.f32.mrb[0].mxu0
    %436 = vdwg.mxu0
    %v437 = vpack.c.bf16 %v306, %v303
    %v439 = vunpack.c.l.b16 %v437
    %v440 = vunpack.c.h.b16 %v437
    %v441 = vpack.c.b16 %v439, %v439
    %v442 = vpack.c.b16 %v440, %v440
    %v443 = vpack.c.bf16 %v370, %v367
    %v445 = vunpack.c.l.b16 %v443
    %v446 = vunpack.c.h.b16 %v443
    %v447 = vpack.c.b16 %v445, %v445
    %v448 = vpack.c.b16 %v446, %v446
    %v449 = vpack.c.bf16 %v434, %v431
    %v451 = vunpack.c.l.b16 %v449
    %v452 = vunpack.c.h.b16 %v449
    %v453 = vpack.c.b16 %v451, %v451
    %v454 = vpack.c.b16 %v452, %v452
    %vm455 = vcmask 1043456
    %v457 = vsel %vm455, %v447, %v447
    %v460 = vsel %vm455, %v448, %v448
    %v466 = vunpack.c.l.b16 %v231
    %v467 = vunpack.c.l.b16 %v232
    %v468 = vunpack.c.l.b16 %v233
    %v469 = vunpack.c.l.b16 %v234
    %v470 = vpack.c.b16 %v467, %v466
    %v471 = vpack.c.b16 %v469, %v468
    %v474 = vmul.bf16 %v457, %v470
    %v475 = vmul.bf16 %v457, %v471
    %v476 = vmul.bf16 %v460, %v470
    %v477 = vmul.bf16 %v460, %v471
    %v479 = vsel %vm455, %v453, %v453
    %v482 = vsel %vm455, %v454, %v454
    %v484 = vmul.bf16 %v479, %v470
    %v485 = vmul.bf16 %v479, %v471
    %v486 = vmul.bf16 %v482, %v470
    %v487 = vmul.bf16 %v482, %v471
    %v489 = vsel %vm186, %v441, 0
    %v492 = vsel %vm186, %v474, 0
    %v495 = vsel %vm186, %v475, 0
    %497 = vmatprep.subr.bf16.mxu0 0
    %498 = vmatpush1.bf16.xpose.msra.mxu0 %v492
    %499 = vmatprep.subr.bf16.mxu0 0
    %500 = vmatpush1.bf16.xpose.msra.mxu0 %v495
    %501 = vmatprep.subr.bf16.mxu0 0
    %502 = vmatpush1.bf16.xpose.msra.mxu0 0
    %503 = vmatprep.subr.bf16.mxu0 0
    %504 = vmatpush1.bf16.xpose.msra.mxu0 0
    %505 = vmatprep.subr.bf16.mxu0 0
    %506 = vmatpush1.bf16.xpose.msra.mxu0 0
    %507 = vmatprep.subr.bf16.mxu0 0
    %508 = vmatpush1.bf16.xpose.msra.mxu0 0
    %509 = vmatprep.subr.bf16.mxu0 0
    %510 = vmatpush1.bf16.xpose.msra.mxu0 0
    %511 = vmatprep.subr.bf16.mxu0 0
    %512 = vmatpush1.bf16.xpose.msra.mxu0 0
    %513 = vmatprep.subr.bf16.mxu0 0
    %514 = vmatpush1.bf16.xpose.msra.mxu0 0
    %515 = vmatprep.subr.bf16.mxu0 0
    %516 = vmatpush1.bf16.xpose.msra.mxu0 0
    %517 = vmatprep.subr.bf16.mxu0 0
    %518 = vmatpush1.bf16.xpose.msra.mxu0 0
    %519 = vmatprep.subr.bf16.mxu0 0
    %520 = vmatpush1.bf16.xpose.msra.mxu0 0
    %521 = vmatprep.subr.bf16.mxu0 0
    %522 = vmatpush1.bf16.xpose.msra.mxu0 0
    %523 = vmatprep.subr.bf16.mxu0 0
    %524 = vmatpush1.bf16.xpose.msra.mxu0 0
    %525 = vmatprep.subr.bf16.mxu0 0
    %526 = vmatpush1.bf16.xpose.msra.mxu0 0
    %527 = vmatprep.subr.bf16.mxu0 0
    %528 = vmatpush1.bf16.xpose.msra.mxu0 0
    %529 = vmatprep.mubr.bf16.mxu0 0
    %530 = vmatmul.mubr.bf16.gmra.mrb[0].mxu0 %v489
    %v531 = vpop.f32.mrb[0].mxu0
    %v532 = vadd.f32 0.0, %v531
    %v533 = vpop.f32.mrb[0].mxu0
    %v534 = vpop.f32.mrb[0].mxu0
    %v535 = vpop.f32.mrb[0].mxu0
    %536 = vdwg.mxu0
    %v538 = vsel %vm186, %v442, 0
    %v541 = vsel %vm186, %v476, 0
    %v544 = vsel %vm186, %v477, 0
    %546 = vmatprep.subr.bf16.mxu0 0
    %547 = vmatpush1.bf16.xpose.msra.mxu0 %v541
    %548 = vmatprep.subr.bf16.mxu0 0
    %549 = vmatpush1.bf16.xpose.msra.mxu0 %v544
    %550 = vmatprep.subr.bf16.mxu0 0
    %551 = vmatpush1.bf16.xpose.msra.mxu0 0
    %552 = vmatprep.subr.bf16.mxu0 0
    %553 = vmatpush1.bf16.xpose.msra.mxu0 0
    %554 = vmatprep.subr.bf16.mxu0 0
    %555 = vmatpush1.bf16.xpose.msra.mxu0 0
    %556 = vmatprep.subr.bf16.mxu0 0
    %557 = vmatpush1.bf16.xpose.msra.mxu0 0
    %558 = vmatprep.subr.bf16.mxu0 0
    %559 = vmatpush1.bf16.xpose.msra.mxu0 0
    %560 = vmatprep.subr.bf16.mxu0 0
    %561 = vmatpush1.bf16.xpose.msra.mxu0 0
    %562 = vmatprep.subr.bf16.mxu0 0
    %563 = vmatpush1.bf16.xpose.msra.mxu0 0
    %564 = vmatprep.subr.bf16.mxu0 0
    %565 = vmatpush1.bf16.xpose.msra.mxu0 0
    %566 = vmatprep.subr.bf16.mxu0 0
    %567 = vmatpush1.bf16.xpose.msra.mxu0 0
    %568 = vmatprep.subr.bf16.mxu0 0
    %569 = vmatpush1.bf16.xpose.msra.mxu0 0
    %570 = vmatprep.subr.bf16.mxu0 0
    %571 = vmatpush1.bf16.xpose.msra.mxu0 0
    %572 = vmatprep.subr.bf16.mxu0 0
    %573 = vmatpush1.bf16.xpose.msra.mxu0 0
    %574 = vmatprep.subr.bf16.mxu0 0
    %575 = vmatpush1.bf16.xpose.msra.mxu0 0
    %576 = vmatprep.subr.bf16.mxu0 0
    %577 = vmatpush1.bf16.xpose.msra.mxu0 0
    %578 = vmatprep.mubr.bf16.mxu0 0
    %579 = vmatmul.mubr.bf16.gmra.mrb[0].mxu0 %v538
    %v580 = vpop.f32.mrb[0].mxu0
    %v581 = vadd.f32 0.0, %v580
    %v582 = vpop.f32.mrb[0].mxu0
    %v583 = vpop.f32.mrb[0].mxu0
    %v584 = vpop.f32.mrb[0].mxu0
    %585 = vdwg.mxu0
    %v586 = vmul.f32 %v532, 0.35355338
    %v587 = vmul.f32 %v581, 0.35355338
    %v588 = vsel %vm184, %v586, -inf
    %v589 = vsel %vm185, %v587, -inf
    %v590 = vsel %vm203, %v588, 0.0
    %v591 = vsel %vm204, %v589, 0.0
    %v592 = vsel %vm186, %v590, -inf
    %593 = vmax.xlane.f32.xlu0 %v592
    %v594 = vpop.xlane.xlu0 %593
    %v595 = vsel %vm186, %v591, -inf
    %596 = vmax.xlane.f32.xlu0 %v595
    %v597 = vpop.xlane.xlu0 %596
    %v598 = vsub.f32 %v590, %v594
    %v599 = vsub.f32 %v591, %v597
    %v600 = vmul.f32 %v598, 1.442695
    %v601 = vpow.pop %v600
    %v602 = vmul.f32 %v599, 1.442695
    %v603 = vpow.pop %v602
    %v605 = vsel %vm186, %v601, 0
    %v608 = vsel %vm186, %v603, 0
    %610 = vmatprep.subr.mxu0 0.0
    %611 = vmatpush1.msra.mxu0 %v235
    %612 = vmatprep.subr.mxu0 0.0
    %613 = vmatpush1.msra.mxu0 %v236
    %614 = vmatprep.subr.mxu0 0.0
    %615 = vmatpush1.msra.mxu0 %v237
    %616 = vmatprep.subr.mxu0 0.0
    %617 = vmatpush1.msra.mxu0 %v238
    %618 = vmatprep.subr.mxu0 0.0
    %619 = vmatpush1.msra.mxu0 0.0
    %620 = vmatprep.subr.mxu0 0.0
    %621 = vmatpush1.msra.mxu0 0.0
    %622 = vmatprep.subr.mxu0 0.0
    %623 = vmatpush1.msra.mxu0 0.0
    %624 = vmatprep.subr.mxu0 0.0
    %625 = vmatpush1.msra.mxu0 0.0
    %626 = vmatprep.subr.mxu0 0.0
    %627 = vmatpush1.msra.mxu0 0.0
    %628 = vmatprep.subr.mxu0 0.0
    %629 = vmatpush1.msra.mxu0 0.0
    %630 = vmatprep.subr.mxu0 0.0
    %631 = vmatpush1.msra.mxu0 0.0
    %632 = vmatprep.subr.mxu0 0.0
    %633 = vmatpush1.msra.mxu0 0.0
    %634 = vmatprep.subr.mxu0 0.0
    %635 = vmatpush1.msra.mxu0 0.0
    %636 = vmatprep.subr.mxu0 0.0
    %637 = vmatpush1.msra.mxu0 0.0
    %638 = vmatprep.subr.mxu0 0.0
    %639 = vmatpush1.msra.mxu0 0.0
    %640 = vmatprep.subr.mxu0 0.0
    %641 = vmatpush1.msra.mxu0 0.0
    %642 = vmatprep.subr.mxu0 0.0
    %643 = vmatpush1.msra.mxu0 0.0
    %644 = vmatprep.subr.mxu0 0.0
    %645 = vmatpush1.msra.mxu0 0.0
    %646 = vmatprep.subr.mxu0 0.0
    %647 = vmatpush1.msra.mxu0 0.0
    %648 = vmatprep.subr.mxu0 0.0
    %649 = vmatpush1.msra.mxu0 0.0
    %650 = vmatprep.subr.mxu0 0.0
    %651 = vmatpush1.msra.mxu0 0.0
    %652 = vmatprep.subr.mxu0 0.0
    %653 = vmatpush1.msra.mxu0 0.0
    %654 = vmatprep.subr.mxu0 0.0
    %655 = vmatpush1.msra.mxu0 0.0
    %656 = vmatprep.subr.mxu0 0.0
    %657 = vmatpush1.msra.mxu0 0.0
    %658 = vmatprep.subr.mxu0 0.0
    %659 = vmatpush1.msra.mxu0 0.0
    %660 = vmatprep.subr.mxu0 0.0
    %661 = vmatpush1.msra.mxu0 0.0
    %662 = vmatprep.subr.mxu0 0.0
    %663 = vmatpush1.msra.mxu0 0.0
    %664 = vmatprep.subr.mxu0 0.0
    %665 = vmatpush1.msra.mxu0 0.0
    %666 = vmatprep.subr.mxu0 0.0
    %667 = vmatpush1.msra.mxu0 0.0
    %668 = vmatprep.subr.mxu0 0.0
    %669 = vmatpush1.msra.mxu0 0.0
    %670 = vmatprep.subr.mxu0 0.0
    %671 = vmatpush1.msra.mxu0 0.0
    %672 = vmatprep.subr.mxu0 0.0
    %673 = vmatpush1.msra.mxu0 0.0
    %674 = vmatprep.mubr.f32.mxu0 0.0
    %675 = vmatmul.mubr.f32.gmra.mrb[0].mxu0 %v605
    %v676 = vpop.f32.mrb[0].mxu0
    %v677 = vadd.f32 0.0, %v676
    %v678 = vpop.f32.mrb[0].mxu0
    %679 = vmatprep.mubr.f32.mxu0 0.0
    %680 = vmatmul.mubr.f32.gmra.mrb[0].mxu0 %v608
    %v681 = vpop.f32.mrb[0].mxu0
    %v682 = vadd.f32 0.0, %v681
    %v683 = vpop.f32.mrb[0].mxu0
    %684 = vdwg.mxu0
    %v685 = vrcp.pop %v677
    %v686 = vrcp.pop %v682
    %v687 = vmul.f32 %v601, %v685
    %v688 = vmul.f32 %v603, %v686
    %v689 = vadd.f32 %v687, %v229
    %v690 = vadd.f32 %v688, %v230
    %v691 = vmul.f32 %v689, 0.5
    %v692 = vmul.f32 %v690, 0.5
    %v693 = vpack.c.bf16 %v691, %v691
    %v694 = vpack.c.bf16 %v692, %v692
    %v696 = vsel %vm186, %v693, 0
    %698 = vmatprep.subr.bf16.mxu0 0
    %699 = vmatpush1.bf16.msra.mxu0 %v484
    %700 = vmatprep.subr.bf16.mxu0 0
    %701 = vmatpush1.bf16.msra.mxu0 %v485
    %702 = vmatprep.subr.bf16.mxu0 0
    %703 = vmatpush1.bf16.msra.mxu0 0
    %704 = vmatprep.subr.bf16.mxu0 0
    %705 = vmatpush1.bf16.msra.mxu0 0
    %706 = vmatprep.subr.bf16.mxu0 0
    %707 = vmatpush1.bf16.msra.mxu0 0
    %708 = vmatprep.subr.bf16.mxu0 0
    %709 = vmatpush1.bf16.msra.mxu0 0
    %710 = vmatprep.subr.bf16.mxu0 0
    %711 = vmatpush1.bf16.msra.mxu0 0
    %712 = vmatprep.subr.bf16.mxu0 0
    %713 = vmatpush1.bf16.msra.mxu0 0
    %714 = vmatprep.subr.bf16.mxu0 0
    %715 = vmatpush1.bf16.msra.mxu0 0
    %716 = vmatprep.subr.bf16.mxu0 0
    %717 = vmatpush1.bf16.msra.mxu0 0
    %718 = vmatprep.subr.bf16.mxu0 0
    %719 = vmatpush1.bf16.msra.mxu0 0
    %720 = vmatprep.subr.bf16.mxu0 0
    %721 = vmatpush1.bf16.msra.mxu0 0
    %722 = vmatprep.subr.bf16.mxu0 0
    %723 = vmatpush1.bf16.msra.mxu0 0
    %724 = vmatprep.subr.bf16.mxu0 0
    %725 = vmatpush1.bf16.msra.mxu0 0
    %726 = vmatprep.subr.bf16.mxu0 0
    %727 = vmatpush1.bf16.msra.mxu0 0
    %728 = vmatprep.subr.bf16.mxu0 0
    %729 = vmatpush1.bf16.msra.mxu0 0
    %730 = vmatprep.mubr.bf16.mxu0 0
    %731 = vmatmul.mubr.bf16.gmra.mrb[0].mxu0 %v696
    %v732 = vpop.f32.mrb[0].mxu0
    %v733 = vadd.f32 0.0, %v732
    %v734 = vpop.f32.mrb[0].mxu0
    %v735 = vpop.f32.mrb[0].mxu0
    %v736 = vpop.f32.mrb[0].mxu0
    %737 = vdwg.mxu0
    %v739 = vsel %vm186, %v694, 0
    %741 = vmatprep.subr.bf16.mxu0 0
    %742 = vmatpush1.bf16.msra.mxu0 %v486
    %743 = vmatprep.subr.bf16.mxu0 0
    %744 = vmatpush1.bf16.msra.mxu0 %v487
    %745 = vmatprep.subr.bf16.mxu0 0
    %746 = vmatpush1.bf16.msra.mxu0 0
    %747 = vmatprep.subr.bf16.mxu0 0
    %748 = vmatpush1.bf16.msra.mxu0 0
    %749 = vmatprep.subr.bf16.mxu0 0
    %750 = vmatpush1.bf16.msra.mxu0 0
    %751 = vmatprep.subr.bf16.mxu0 0
    %752 = vmatpush1.bf16.msra.mxu0 0
    %753 = vmatprep.subr.bf16.mxu0 0
    %754 = vmatpush1.bf16.msra.mxu0 0
    %755 = vmatprep.subr.bf16.mxu0 0
    %756 = vmatpush1.bf16.msra.mxu0 0
    %757 = vmatprep.subr.bf16.mxu0 0
    %758 = vmatpush1.bf16.msra.mxu0 0
    %759 = vmatprep.subr.bf16.mxu0 0
    %760 = vmatpush1.bf16.msra.mxu0 0
    %761 = vmatprep.subr.bf16.mxu0 0
    %762 = vmatpush1.bf16.msra.mxu0 0
    %763 = vmatprep.subr.bf16.mxu0 0
    %764 = vmatpush1.bf16.msra.mxu0 0
    %765 = vmatprep.subr.bf16.mxu0 0
    %766 = vmatpush1.bf16.msra.mxu0 0
    %767 = vmatprep.subr.bf16.mxu0 0
    %768 = vmatpush1.bf16.msra.mxu0 0
    %769 = vmatprep.subr.bf16.mxu0 0
    %770 = vmatpush1.bf16.msra.mxu0 0
    %771 = vmatprep.subr.bf16.mxu0 0
    %772 = vmatpush1.bf16.msra.mxu0 0
    %773 = vmatprep.mubr.bf16.mxu0 0
    %774 = vmatmul.mubr.bf16.gmra.mrb[0].mxu0 %v739
    %v775 = vpop.f32.mrb[0].mxu0
    %v776 = vadd.f32 0.0, %v775
    %v777 = vpop.f32.mrb[0].mxu0
    %v778 = vpop.f32.mrb[0].mxu0
    %v779 = vpop.f32.mrb[0].mxu0
    %780 = vdwg.mxu0
    %v781 = vpack.c.bf16 %v776, %v733
    %v782 = vld [vmem:[#allocation13] sm:$0xf]
    %v783 = vld [vmem:[#allocation13 + $0x4] sm:$0xf]
    %v784 = vld [vmem:[#allocation13 + $0x8] sm:$0xf]
    %v785 = vld [vmem:[#allocation13 + $0xc] sm:$0xf]
    %v786 = vld [vmem:[%s13] sm:$0x1]
    %v788 = vlaneseq
    %v789 = vshrl.u32 %v788, 7
    %v790 = vsub.s32 0, %v789
    %v791 = vrot.slane %v786, %v790
    %v797 = vunpack.c.l.b16 %v782
    %v798 = vunpack.c.l.b16 %v783
    %v799 = vunpack.c.l.b16 %v784
    %v800 = vunpack.c.l.b16 %v785
    %v801 = vpack.c.b16 %v798, %v797
    %v802 = vpack.c.b16 %v800, %v799
    %v806 = vsel %vm186, %v781, 0
    %808 = vmatprep.subr.bf16.mxu0 0
    %809 = vmatpush1.bf16.msra.mxu0 %v801
    %810 = vmatprep.subr.bf16.mxu0 0
    %811 = vmatpush1.bf16.msra.mxu0 %v802
    %812 = vmatprep.subr.bf16.mxu0 0
    %813 = vmatpush1.bf16.msra.mxu0 0
    %814 = vmatprep.subr.bf16.mxu0 0
    %815 = vmatpush1.bf16.msra.mxu0 0
    %816 = vmatprep.subr.bf16.mxu0 0
    %817 = vmatpush1.bf16.msra.mxu0 0
    %818 = vmatprep.subr.bf16.mxu0 0
    %819 = vmatpush1.bf16.msra.mxu0 0
    %820 = vmatprep.subr.bf16.mxu0 0
    %821 = vmatpush1.bf16.msra.mxu0 0
    %822 = vmatprep.subr.bf16.mxu0 0
    %823 = vmatpush1.bf16.msra.mxu0 0
    %824 = vmatprep.subr.bf16.mxu0 0
    %825 = vmatpush1.bf16.msra.mxu0 0
    %826 = vmatprep.subr.bf16.mxu0 0
    %827 = vmatpush1.bf16.msra.mxu0 0
    %828 = vmatprep.subr.bf16.mxu0 0
    %829 = vmatpush1.bf16.msra.mxu0 0
    %830 = vmatprep.subr.bf16.mxu0 0
    %831 = vmatpush1.bf16.msra.mxu0 0
    %832 = vmatprep.subr.bf16.mxu0 0
    %833 = vmatpush1.bf16.msra.mxu0 0
    %834 = vmatprep.subr.bf16.mxu0 0
    %835 = vmatpush1.bf16.msra.mxu0 0
    %836 = vmatprep.subr.bf16.mxu0 0
    %837 = vmatpush1.bf16.msra.mxu0 0
    %838 = vmatprep.subr.bf16.mxu0 0
    %839 = vmatpush1.bf16.msra.mxu0 0
    %840 = vmatprep.mubr.bf16.mxu0 0
    %841 = vmatmul.mubr.bf16.gmra.mrb[0].mxu0 %v806
    %v842 = vpop.f32.mrb[0].mxu0
    %v843 = vadd.f32 %v791, %v842
    %v844 = vpop.f32.mrb[0].mxu0
    %v845 = vpop.f32.mrb[0].mxu0
    %v846 = vadd.f32 %v791, %v845
    %v847 = vpop.f32.mrb[0].mxu0
    %848 = vdwg.mxu0
    %v849 = vadd.f32 %v239, %v843
    %v850 = vadd.f32 %v240, %v846
    %v851 = vsel %vm186, %v849, 0.0
    %852 = vadd.xlane.f32.xlu0 %v851
    %v853 = vpop.xlane.xlu0 %852
    %v854 = vsel %vm186, %v850, 0.0
    %855 = vadd.xlane.f32.xlu0 %v854
    %v856 = vpop.xlane.xlu0 %855
    %v857 = vrcp.pop 32.0
    %v858 = vmul.f32 %v853, %v857
    %v859 = vmul.f32 %v856, %v857
    %v860 = vsub.f32 %v849, %v858
    %v861 = vsub.f32 %v850, %v859
    %v862 = vmul.f32 %v860, %v860
    %v863 = vmul.f32 %v861, %v861
    %v864 = vsel %vm186, %v862, 0.0
    %865 = vadd.xlane.f32.xlu0 %v864
    %v866 = vpop.xlane.xlu0 %865
    %v867 = vsel %vm186, %v863, 0.0
    %868 = vadd.xlane.f32.xlu0 %v867
    %v869 = vpop.xlane.xlu0 %868
    %v870 = vmul.f32 %v866, %v857
    %v871 = vmul.f32 %v869, %v857
    %v872 = vadd.f32 %v870, 1e-05
    %v873 = vadd.f32 %v871, 1e-05
    %v874 = vrsqrt.pop %v872
    %v875 = vrsqrt.pop %v873
    %v876 = vmul.f32 %v860, %v874
    %v877 = vmul.f32 %v861, %v875
    %v878 = vld [vmem:[%s14] sm:$0x1]
    %v880 = vlaneseq
    %v881 = vshrl.u32 %v880, 7
    %v882 = vsub.s32 0, %v881
    %v883 = vrot.slane %v878, %v882
    %v885 = vmul.f32 %v876, %v883
    %v886 = vmul.f32 %v877, %v883
    %v887 = vld [vmem:[%s15] sm:$0x1]
    %v889 = vlaneseq
    %v890 = vshrl.u32 %v889, 7
    %v891 = vsub.s32 0, %v890
    %v892 = vrot.slane %v887, %v891
    %v894 = vadd.f32 %v885, %v892
    %v895 = vadd.f32 %v886, %v892
    %v896 = vpack.c.bf16 %v895, %v894
    %s897 = scalar_lea.vmem [#allocation8], 16
    %v898 = vld [vmem:[%s897] sm:$0xf]
    %v899 = vld [vmem:[%s897 + $0x4] sm:$0xf]
    %v900 = vld [vmem:[%s897 + $0x8] sm:$0xf]
    %v901 = vld [vmem:[%s897 + $0xc] sm:$0xf]
    %s902 = scalar_lea.vmem %s7, 1
    %v903 = vld [vmem:[%s902] sm:$0x1]
    %v905 = vlaneseq
    %v906 = vshrl.u32 %v905, 7
    %v907 = vsub.s32 0, %v906
    %v908 = vrot.slane %v903, %v907
    %v914 = vunpack.c.l.b16 %v898
    %v915 = vunpack.c.l.b16 %v899
    %v916 = vunpack.c.l.b16 %v900
    %v917 = vunpack.c.l.b16 %v901
    %v918 = vpack.c.b16 %v915, %v914
    %v919 = vpack.c.b16 %v917, %v916
    %v923 = vsel %vm186, %v896, 0
    %925 = vmatprep.subr.bf16.mxu0 0
    %926 = vmatpush1.bf16.msra.mxu0 %v918
    %927 = vmatprep.subr.bf16.mxu0 0
    %928 = vmatpush1.bf16.msra.mxu0 %v919
    %929 = vmatprep.subr.bf16.mxu0 0
    %930 = vmatpush1.bf16.msra.mxu0 0
    %931 = vmatprep.subr.bf16.mxu0 0
    %932 = vmatpush1.bf16.msra.mxu0 0
    %933 = vmatprep.subr.bf16.mxu0 0
    %934 = vmatpush1.bf16.msra.mxu0 0
    %935 = vmatprep.subr.bf16.mxu0 0
    %936 = vmatpush1.bf16.msra.mxu0 0
    %937 = vmatprep.subr.bf16.mxu0 0
    %938 = vmatpush1.bf16.msra.mxu0 0
    %939 = vmatprep.subr.bf16.mxu0 0
    %940 = vmatpush1.bf16.msra.mxu0 0
    %941 = vmatprep.subr.bf16.mxu0 0
    %942 = vmatpush1.bf16.msra.mxu0 0
    %943 = vmatprep.subr.bf16.mxu0 0
    %944 = vmatpush1.bf16.msra.mxu0 0
    %945 = vmatprep.subr.bf16.mxu0 0
    %946 = vmatpush1.bf16.msra.mxu0 0
    %947 = vmatprep.subr.bf16.mxu0 0
    %948 = vmatpush1.bf16.msra.mxu0 0
    %949 = vmatprep.subr.bf16.mxu0 0
    %950 = vmatpush1.bf16.msra.mxu0 0
    %951 = vmatprep.subr.bf16.mxu0 0
    %952 = vmatpush1.bf16.msra.mxu0 0
    %953 = vmatprep.subr.bf16.mxu0 0
    %954 = vmatpush1.bf16.msra.mxu0 0
    %955 = vmatprep.subr.bf16.mxu0 0
    %956 = vmatpush1.bf16.msra.mxu0 0
    %957 = vmatprep.mubr.bf16.mxu0 0
    %958 = vmatmul.mubr.bf16.gmra.mrb[0].mxu0 %v923
    %v959 = vpop.f32.mrb[0].mxu0
    %v960 = vadd.f32 %v908, %v959
    %v961 = vpop.f32.mrb[0].mxu0
    %v962 = vpop.f32.mrb[0].mxu0
    %v963 = vadd.f32 %v908, %v962
    %v964 = vpop.f32.mrb[0].mxu0
    %965 = vdwg.mxu0
    %s966 = scalar_lea.vmem [#allocation10], 16
    %v967 = vld [vmem:[%s966] sm:$0xf]
    %v968 = vld [vmem:[%s966 + $0x4] sm:$0xf]
    %v969 = vld [vmem:[%s966 + $0x8] sm:$0xf]
    %v970 = vld [vmem:[%s966 + $0xc] sm:$0xf]
    %s971 = scalar_lea.vmem %s9, 1
    %v972 = vld [vmem:[%s971] sm:$0x1]
    %v974 = vlaneseq
    %v975 = vshrl.u32 %v974, 7
    %v976 = vsub.s32 0, %v975
    %v977 = vrot.slane %v972, %v976
    %v983 = vunpack.c.l.b16 %v967
    %v984 = vunpack.c.l.b16 %v968
    %v985 = vunpack.c.l.b16 %v969
    %v986 = vunpack.c.l.b16 %v970
    %v987 = vpack.c.b16 %v984, %v983
    %v988 = vpack.c.b16 %v986, %v985
    %991 = vmatprep.subr.bf16.mxu0 0
    %992 = vmatpush1.bf16.msra.mxu0 %v987
    %993 = vmatprep.subr.bf16.mxu0 0
    %994 = vmatpush1.bf16.msra.mxu0 %v988
    %995 = vmatprep.subr.bf16.mxu0 0
    %996 = vmatpush1.bf16.msra.mxu0 0
    %997 = vmatprep.subr.bf16.mxu0 0
    %998 = vmatpush1.bf16.msra.mxu0 0
    %999 = vmatprep.subr.bf16.mxu0 0
    %1000 = vmatpush1.bf16.msra.mxu0 0
    %1001 = vmatprep.subr.bf16.mxu0 0
    %1002 = vmatpush1.bf16.msra.mxu0 0
    %1003 = vmatprep.subr.bf16.mxu0 0
    %1004 = vmatpush1.bf16.msra.mxu0 0
    %1005 = vmatprep.subr.bf16.mxu0 0
    %1006 = vmatpush1.bf16.msra.mxu0 0
    %1007 = vmatprep.subr.bf16.mxu0 0
    %1008 = vmatpush1.bf16.msra.mxu0 0
    %1009 = vmatprep.subr.bf16.mxu0 0
    %1010 = vmatpush1.bf16.msra.mxu0 0
    %1011 = vmatprep.subr.bf16.mxu0 0
    %1012 = vmatpush1.bf16.msra.mxu0 0
    %1013 = vmatprep.subr.bf16.mxu0 0
    %1014 = vmatpush1.bf16.msra.mxu0 0
    %1015 = vmatprep.subr.bf16.mxu0 0
    %1016 = vmatpush1.bf16.msra.mxu0 0
    %1017 = vmatprep.subr.bf16.mxu0 0
    %1018 = vmatpush1.bf16.msra.mxu0 0
    %1019 = vmatprep.subr.bf16.mxu0 0
    %1020 = vmatpush1.bf16.msra.mxu0 0
    %1021 = vmatprep.subr.bf16.mxu0 0
    %1022 = vmatpush1.bf16.msra.mxu0 0
    %1023 = vmatprep.mubr.bf16.mxu0 0
    %1024 = vmatmul.mubr.bf16.gmra.mrb[0].mxu0 %v923
    %v1025 = vpop.f32.mrb[0].mxu0
    %v1026 = vadd.f32 %v977, %v1025
    %v1027 = vpop.f32.mrb[0].mxu0
    %v1028 = vpop.f32.mrb[0].mxu0
    %v1029 = vadd.f32 %v977, %v1028
    %v1030 = vpop.f32.mrb[0].mxu0
    %1031 = vdwg.mxu0
    %s1032 = scalar_lea.vmem [#allocation11], 16
    %v1033 = vld [vmem:[%s1032] sm:$0xf]
    %v1034 = vld [vmem:[%s1032 + $0x4] sm:$0xf]
    %v1035 = vld [vmem:[%s1032 + $0x8] sm:$0xf]
    %v1036 = vld [vmem:[%s1032 + $0xc] sm:$0xf]
    %s1037 = scalar_lea.vmem %s11, 1
    %v1038 = vld [vmem:[%s1037] sm:$0x1]
    %v1040 = vlaneseq
    %v1041 = vshrl.u32 %v1040, 7
    %v1042 = vsub.s32 0, %v1041
    %v1043 = vrot.slane %v1038, %v1042
    %v1049 = vunpack.c.l.b16 %v1033
    %v1050 = vunpack.c.l.b16 %v1034
    %v1051 = vunpack.c.l.b16 %v1035
    %v1052 = vunpack.c.l.b16 %v1036
    %v1053 = vpack.c.b16 %v1050, %v1049
    %v1054 = vpack.c.b16 %v1052, %v1051
    %1057 = vmatprep.subr.bf16.mxu0 0
    %1058 = vmatpush1.bf16.msra.mxu0 %v1053
    %1059 = vmatprep.subr.bf16.mxu0 0
    %1060 = vmatpush1.bf16.msra.mxu0 %v1054
    %1061 = vmatprep.subr.bf16.mxu0 0
    %1062 = vmatpush1.bf16.msra.mxu0 0
    %1063 = vmatprep.subr.bf16.mxu0 0
    %1064 = vmatpush1.bf16.msra.mxu0 0
    %1065 = vmatprep.subr.bf16.mxu0 0
    %1066 = vmatpush1.bf16.msra.mxu0 0
    %1067 = vmatprep.subr.bf16.mxu0 0
    %1068 = vmatpush1.bf16.msra.mxu0 0
    %1069 = vmatprep.subr.bf16.mxu0 0
    %1070 = vmatpush1.bf16.msra.mxu0 0
    %1071 = vmatprep.subr.bf16.mxu0 0
    %1072 = vmatpush1.bf16.msra.mxu0 0
    %1073 = vmatprep.subr.bf16.mxu0 0
    %1074 = vmatpush1.bf16.msra.mxu0 0
    %1075 = vmatprep.subr.bf16.mxu0 0
    %1076 = vmatpush1.bf16.msra.mxu0 0
    %1077 = vmatprep.subr.bf16.mxu0 0
    %1078 = vmatpush1.bf16.msra.mxu0 0
    %1079 = vmatprep.subr.bf16.mxu0 0
    %1080 = vmatpush1.bf16.msra.mxu0 0
    %1081 = vmatprep.subr.bf16.mxu0 0
    %1082 = vmatpush1.bf16.msra.mxu0 0
    %1083 = vmatprep.subr.bf16.mxu0 0
    %1084 = vmatpush1.bf16.msra.mxu0 0
    %1085 = vmatprep.subr.bf16.mxu0 0
    %1086 = vmatpush1.bf16.msra.mxu0 0
    %1087 = vmatprep.subr.bf16.mxu0 0
    %1088 = vmatpush1.bf16.msra.mxu0 0
    %1089 = vmatprep.mubr.bf16.mxu0 0
    %1090 = vmatmul.mubr.bf16.gmra.mrb[0].mxu0 %v923
    %v1091 = vpop.f32.mrb[0].mxu0
    %v1092 = vadd.f32 %v1043, %v1091
    %v1093 = vpop.f32.mrb[0].mxu0
    %v1094 = vpop.f32.mrb[0].mxu0
    %v1095 = vadd.f32 %v1043, %v1094
    %v1096 = vpop.f32.mrb[0].mxu0
    %1097 = vdwg.mxu0
    %v1098 = vpack.c.bf16 %v963, %v960
    %v1100 = vunpack.c.l.b16 %v1098
    %v1101 = vunpack.c.h.b16 %v1098
    %v1102 = vpack.c.b16 %v1100, %v1100
    %v1103 = vpack.c.b16 %v1101, %v1101
    %v1104 = vpack.c.bf16 %v1029, %v1026
    %v1106 = vunpack.c.l.b16 %v1104
    %v1107 = vunpack.c.h.b16 %v1104
    %v1108 = vpack.c.b16 %v1106, %v1106
    %v1109 = vpack.c.b16 %v1107, %v1107
    %v1110 = vpack.c.bf16 %v1095, %v1092
    %v1112 = vunpack.c.l.b16 %v1110
    %v1113 = vunpack.c.h.b16 %v1110
    %v1114 = vpack.c.b16 %v1112, %v1112
    %v1115 = vpack.c.b16 %v1113, %v1113
    %v1117 = vsel %vm455, %v1108, %v1108
    %v1120 = vsel %vm455, %v1109, %v1109
    %v1122 = vmul.bf16 %v1117, %v470
    %v1123 = vmul.bf16 %v1117, %v471
    %v1124 = vmul.bf16 %v1120, %v470
    %v1125 = vmul.bf16 %v1120, %v471
    %v1127 = vsel %vm455, %v1114, %v1114
    %v1130 = vsel %vm455, %v1115, %v1115
    %v1132 = vmul.bf16 %v1127, %v470
    %v1133 = vmul.bf16 %v1127, %v471
    %v1134 = vmul.bf16 %v1130, %v470
    %v1135 = vmul.bf16 %v1130, %v471
    %v1137 = vsel %vm186, %v1102, 0
    %v1140 = vsel %vm186, %v1122, 0
    %v1143 = vsel %vm186, %v1123, 0
    %1145 = vmatprep.subr.bf16.mxu0 0
    %1146 = vmatpush1.bf16.xpose.msra.mxu0 %v1140
    %1147 = vmatprep.subr.bf16.mxu0 0
    %1148 = vmatpush1.bf16.xpose.msra.mxu0 %v1143
    %1149 = vmatprep.subr.bf16.mxu0 0
    %1150 = vmatpush1.bf16.xpose.msra.mxu0 0
    %1151 = vmatprep.subr.bf16.mxu0 0
    %1152 = vmatpush1.bf16.xpose.msra.mxu0 0
    %1153 = vmatprep.subr.bf16.mxu0 0
    %1154 = vmatpush1.bf16.xpose.msra.mxu0 0
    %1155 = vmatprep.subr.bf16.mxu0 0
    %1156 = vmatpush1.bf16.xpose.msra.mxu0 0
    %1157 = vmatprep.subr.bf16.mxu0 0
    %1158 = vmatpush1.bf16.xpose.msra.mxu0 0
    %1159 = vmatprep.subr.bf16.mxu0 0
    %1160 = vmatpush1.bf16.xpose.msra.mxu0 0
    %1161 = vmatprep.subr.bf16.mxu0 0
    %1162 = vmatpush1.bf16.xpose.msra.mxu0 0
    %1163 = vmatprep.subr.bf16.mxu0 0
    %1164 = vmatpush1.bf16.xpose.msra.mxu0 0
    %1165 = vmatprep.subr.bf16.mxu0 0
    %1166 = vmatpush1.bf16.xpose.msra.mxu0 0
    %1167 = vmatprep.subr.bf16.mxu0 0
    %1168 = vmatpush1.bf16.xpose.msra.mxu0 0
    %1169 = vmatprep.subr.bf16.mxu0 0
    %1170 = vmatpush1.bf16.xpose.msra.mxu0 0
    %1171 = vmatprep.subr.bf16.mxu0 0
    %1172 = vmatpush1.bf16.xpose.msra.mxu0 0
    %1173 = vmatprep.subr.bf16.mxu0 0
    %1174 = vmatpush1.bf16.xpose.msra.mxu0 0
    %1175 = vmatprep.subr.bf16.mxu0 0
    %1176 = vmatpush1.bf16.xpose.msra.mxu0 0
    %1177 = vmatprep.mubr.bf16.mxu0 0
    %1178 = vmatmul.mubr.bf16.gmra.mrb[0].mxu0 %v1137
    %v1179 = vpop.f32.mrb[0].mxu0
    %v1180 = vadd.f32 0.0, %v1179
    %v1181 = vpop.f32.mrb[0].mxu0
    %v1182 = vpop.f32.mrb[0].mxu0
    %v1183 = vpop.f32.mrb[0].mxu0
    %1184 = vdwg.mxu0
    %v1186 = vsel %vm186, %v1103, 0
    %v1189 = vsel %vm186, %v1124, 0
    %v1192 = vsel %vm186, %v1125, 0
    %1194 = vmatprep.subr.bf16.mxu0 0
    %1195 = vmatpush1.bf16.xpose.msra.mxu0 %v1189
    %1196 = vmatprep.subr.bf16.mxu0 0
    %1197 = vmatpush1.bf16.xpose.msra.mxu0 %v1192
    %1198 = vmatprep.subr.bf16.mxu0 0
    %1199 = vmatpush1.bf16.xpose.msra.mxu0 0
    %1200 = vmatprep.subr.bf16.mxu0 0
    %1201 = vmatpush1.bf16.xpose.msra.mxu0 0
    %1202 = vmatprep.subr.bf16.mxu0 0
    %1203 = vmatpush1.bf16.xpose.msra.mxu0 0
    %1204 = vmatprep.subr.bf16.mxu0 0
    %1205 = vmatpush1.bf16.xpose.msra.mxu0 0
    %1206 = vmatprep.subr.bf16.mxu0 0
    %1207 = vmatpush1.bf16.xpose.msra.mxu0 0
    %1208 = vmatprep.subr.bf16.mxu0 0
    %1209 = vmatpush1.bf16.xpose.msra.mxu0 0
    %1210 = vmatprep.subr.bf16.mxu0 0
    %1211 = vmatpush1.bf16.xpose.msra.mxu0 0
    %1212 = vmatprep.subr.bf16.mxu0 0
    %1213 = vmatpush1.bf16.xpose.msra.mxu0 0
    %1214 = vmatprep.subr.bf16.mxu0 0
    %1215 = vmatpush1.bf16.xpose.msra.mxu0 0
    %1216 = vmatprep.subr.bf16.mxu0 0
    %1217 = vmatpush1.bf16.xpose.msra.mxu0 0
    %1218 = vmatprep.subr.bf16.mxu0 0
    %1219 = vmatpush1.bf16.xpose.msra.mxu0 0
    %1220 = vmatprep.subr.bf16.mxu0 0
    %1221 = vmatpush1.bf16.xpose.msra.mxu0 0
    %1222 = vmatprep.subr.bf16.mxu0 0
    %1223 = vmatpush1.bf16.xpose.msra.mxu0 0
    %1224 = vmatprep.subr.bf16.mxu0 0
    %1225 = vmatpush1.bf16.xpose.msra.mxu0 0
    %1226 = vmatprep.mubr.bf16.mxu0 0
    %1227 = vmatmul.mubr.bf16.gmra.mrb[0].mxu0 %v1186
    %v1228 = vpop.f32.mrb[0].mxu0
    %v1229 = vadd.f32 0.0, %v1228
    %v1230 = vpop.f32.mrb[0].mxu0
    %v1231 = vpop.f32.mrb[0].mxu0
    %v1232 = vpop.f32.mrb[0].mxu0
    %1233 = vdwg.mxu0
    %v1234 = vmul.f32 %v1180, 0.35355338
    %v1235 = vmul.f32 %v1229, 0.35355338
    %v1236 = vsel %vm184, %v1234, -inf
    %v1237 = vsel %vm185, %v1235, -inf
    %v1238 = vsel %vm203, %v1236, 0.0
    %v1239 = vsel %vm204, %v1237, 0.0
    %v1240 = vsel %vm186, %v1238, -inf
    %1241 = vmax.xlane.f32.xlu0 %v1240
    %v1242 = vpop.xlane.xlu0 %1241
    %v1243 = vsel %vm186, %v1239, -inf
    %1244 = vmax.xlane.f32.xlu0 %v1243
    %v1245 = vpop.xlane.xlu0 %1244
    %v1246 = vsub.f32 %v1238, %v1242
    %v1247 = vsub.f32 %v1239, %v1245
    %v1248 = vmul.f32 %v1246, 1.442695
    %v1249 = vpow.pop %v1248
    %v1250 = vmul.f32 %v1247, 1.442695
    %v1251 = vpow.pop %v1250
    %v1253 = vsel %vm186, %v1249, 0
    %v1256 = vsel %vm186, %v1251, 0
    %1258 = vmatprep.subr.mxu0 0.0
    %1259 = vmatpush1.msra.mxu0 %v235
    %1260 = vmatprep.subr.mxu0 0.0
    %1261 = vmatpush1.msra.mxu0 %v236
    %1262 = vmatprep.subr.mxu0 0.0
    %1263 = vmatpush1.msra.mxu0 %v237
    %1264 = vmatprep.subr.mxu0 0.0
    %1265 = vmatpush1.msra.mxu0 %v238
    %1266 = vmatprep.subr.mxu0 0.0
    %1267 = vmatpush1.msra.mxu0 0.0
    %1268 = vmatprep.subr.mxu0 0.0
    %1269 = vmatpush1.msra.mxu0 0.0
    %1270 = vmatprep.subr.mxu0 0.0
    %1271 = vmatpush1.msra.mxu0 0.0
    %1272 = vmatprep.subr.mxu0 0.0
    %1273 = vmatpush1.msra.mxu0 0.0
    %1274 = vmatprep.subr.mxu0 0.0
    %1275 = vmatpush1.msra.mxu0 0.0
    %1276 = vmatprep.subr.mxu0 0.0
    %1277 = vmatpush1.msra.mxu0 0.0
    %1278 = vmatprep.subr.mxu0 0.0
    %1279 = vmatpush1.msra.mxu0 0.0
    %1280 = vmatprep.subr.mxu0 0.0
    %1281 = vmatpush1.msra.mxu0 0.0
    %1282 = vmatprep.subr.mxu0 0.0
    %1283 = vmatpush1.msra.mxu0 0.0
    %1284 = vmatprep.subr.mxu0 0.0
    %1285 = vmatpush1.msra.mxu0 0.0
    %1286 = vmatprep.subr.mxu0 0.0
    %1287 = vmatpush1.msra.mxu0 0.0
    %1288 = vmatprep.subr.mxu0 0.0
    %1289 = vmatpush1.msra.mxu0 0.0
    %1290 = vmatprep.subr.mxu0 0.0
    %1291 = vmatpush1.msra.mxu0 0.0
    %1292 = vmatprep.subr.mxu0 0.0
    %1293 = vmatpush1.msra.mxu0 0.0
    %1294 = vmatprep.subr.mxu0 0.0
    %1295 = vmatpush1.msra.mxu0 0.0
    %1296 = vmatprep.subr.mxu0 0.0
    %1297 = vmatpush1.msra.mxu0 0.0
    %1298 = vmatprep.subr.mxu0 0.0
    %1299 = vmatpush1.msra.mxu0 0.0
    %1300 = vmatprep.subr.mxu0 0.0
    %1301 = vmatpush1.msra.mxu0 0.0
    %1302 = vmatprep.subr.mxu0 0.0
    %1303 = vmatpush1.msra.mxu0 0.0
    %1304 = vmatprep.subr.mxu0 0.0
    %1305 = vmatpush1.msra.mxu0 0.0
    %1306 = vmatprep.subr.mxu0 0.0
    %1307 = vmatpush1.msra.mxu0 0.0
    %1308 = vmatprep.subr.mxu0 0.0
    %1309 = vmatpush1.msra.mxu0 0.0
    %1310 = vmatprep.subr.mxu0 0.0
    %1311 = vmatpush1.msra.mxu0 0.0
    %1312 = vmatprep.subr.mxu0 0.0
    %1313 = vmatpush1.msra.mxu0 0.0
    %1314 = vmatprep.subr.mxu0 0.0
    %1315 = vmatpush1.msra.mxu0 0.0
    %1316 = vmatprep.subr.mxu0 0.0
    %1317 = vmatpush1.msra.mxu0 0.0
    %1318 = vmatprep.subr.mxu0 0.0
    %1319 = vmatpush1.msra.mxu0 0.0
    %1320 = vmatprep.subr.mxu0 0.0
    %1321 = vmatpush1.msra.mxu0 0.0
    %1322 = vmatprep.mubr.f32.mxu0 0.0
    %1323 = vmatmul.mubr.f32.gmra.mrb[0].mxu0 %v1253
    %v1324 = vpop.f32.mrb[0].mxu0
    %v1325 = vadd.f32 0.0, %v1324
    %v1326 = vpop.f32.mrb[0].mxu0
    %1327 = vmatprep.mubr.f32.mxu0 0.0
    %1328 = vmatmul.mubr.f32.gmra.mrb[0].mxu0 %v1256
    %v1329 = vpop.f32.mrb[0].mxu0
    %v1330 = vadd.f32 0.0, %v1329
    %v1331 = vpop.f32.mrb[0].mxu0
    %1332 = vdwg.mxu0
    %v1333 = vrcp.pop %v1325
    %v1334 = vrcp.pop %v1330
    %v1335 = vmul.f32 %v1249, %v1333
    %v1336 = vmul.f32 %v1251, %v1334
    %v1337 = vadd.f32 %v1335, %v229
    %v1338 = vadd.f32 %v1336, %v230
    %v1339 = vmul.f32 %v1337, 0.5
    %v1340 = vmul.f32 %v1338, 0.5
    %v1341 = vpack.c.bf16 %v1339, %v1339
    %v1342 = vpack.c.bf16 %v1340, %v1340
    %v1344 = vsel %vm186, %v1341, 0
    %1346 = vmatprep.subr.bf16.mxu0 0
    %1347 = vmatpush1.bf16.msra.mxu0 %v1132
    %1348 = vmatprep.subr.bf16.mxu0 0
    %1349 = vmatpush1.bf16.msra.mxu0 %v1133
    %1350 = vmatprep.subr.bf16.mxu0 0
    %1351 = vmatpush1.bf16.msra.mxu0 0
    %1352 = vmatprep.subr.bf16.mxu0 0
    %1353 = vmatpush1.bf16.msra.mxu0 0
    %1354 = vmatprep.subr.bf16.mxu0 0
    %1355 = vmatpush1.bf16.msra.mxu0 0
    %1356 = vmatprep.subr.bf16.mxu0 0
    %1357 = vmatpush1.bf16.msra.mxu0 0
    %1358 = vmatprep.subr.bf16.mxu0 0
    %1359 = vmatpush1.bf16.msra.mxu0 0
    %1360 = vmatprep.subr.bf16.mxu0 0
    %1361 = vmatpush1.bf16.msra.mxu0 0
    %1362 = vmatprep.subr.bf16.mxu0 0
    %1363 = vmatpush1.bf16.msra.mxu0 0
    %1364 = vmatprep.subr.bf16.mxu0 0
    %1365 = vmatpush1.bf16.msra.mxu0 0
    %1366 = vmatprep.subr.bf16.mxu0 0
    %1367 = vmatpush1.bf16.msra.mxu0 0
    %1368 = vmatprep.subr.bf16.mxu0 0
    %1369 = vmatpush1.bf16.msra.mxu0 0
    %1370 = vmatprep.subr.bf16.mxu0 0
    %1371 = vmatpush1.bf16.msra.mxu0 0
    %1372 = vmatprep.subr.bf16.mxu0 0
    %1373 = vmatpush1.bf16.msra.mxu0 0
    %1374 = vmatprep.subr.bf16.mxu0 0
    %1375 = vmatpush1.bf16.msra.mxu0 0
    %1376 = vmatprep.subr.bf16.mxu0 0
    %1377 = vmatpush1.bf16.msra.mxu0 0
    %1378 = vmatprep.mubr.bf16.mxu0 0
    %1379 = vmatmul.mubr.bf16.gmra.mrb[0].mxu0 %v1344
    %v1380 = vpop.f32.mrb[0].mxu0
    %v1381 = vadd.f32 0.0, %v1380
    %v1382 = vpop.f32.mrb[0].mxu0
    %v1383 = vpop.f32.mrb[0].mxu0
    %v1384 = vpop.f32.mrb[0].mxu0
    %1385 = vdwg.mxu0
    %v1387 = vsel %vm186, %v1342, 0
    %1389 = vmatprep.subr.bf16.mxu0 0
    %1390 = vmatpush1.bf16.msra.mxu0 %v1134
    %1391 = vmatprep.subr.bf16.mxu0 0
    %1392 = vmatpush1.bf16.msra.mxu0 %v1135
    %1393 = vmatprep.subr.bf16.mxu0 0
    %1394 = vmatpush1.bf16.msra.mxu0 0
    %1395 = vmatprep.subr.bf16.mxu0 0
    %1396 = vmatpush1.bf16.msra.mxu0 0
    %1397 = vmatprep.subr.bf16.mxu0 0
    %1398 = vmatpush1.bf16.msra.mxu0 0
    %1399 = vmatprep.subr.bf16.mxu0 0
    %1400 = vmatpush1.bf16.msra.mxu0 0
    %1401 = vmatprep.subr.bf16.mxu0 0
    %1402 = vmatpush1.bf16.msra.mxu0 0
    %1403 = vmatprep.subr.bf16.mxu0 0
    %1404 = vmatpush1.bf16.msra.mxu0 0
    %1405 = vmatprep.subr.bf16.mxu0 0
    %1406 = vmatpush1.bf16.msra.mxu0 0
    %1407 = vmatprep.subr.bf16.mxu0 0
    %1408 = vmatpush1.bf16.msra.mxu0 0
    %1409 = vmatprep.subr.bf16.mxu0 0
    %1410 = vmatpush1.bf16.msra.mxu0 0
    %1411 = vmatprep.subr.bf16.mxu0 0
    %1412 = vmatpush1.bf16.msra.mxu0 0
    %1413 = vmatprep.subr.bf16.mxu0 0
    %1414 = vmatpush1.bf16.msra.mxu0 0
    %1415 = vmatprep.subr.bf16.mxu0 0
    %1416 = vmatpush1.bf16.msra.mxu0 0
    %1417 = vmatprep.subr.bf16.mxu0 0
    %1418 = vmatpush1.bf16.msra.mxu0 0
    %1419 = vmatprep.subr.bf16.mxu0 0
    %1420 = vmatpush1.bf16.msra.mxu0 0
    %1421 = vmatprep.mubr.bf16.mxu0 0
    %1422 = vmatmul.mubr.bf16.gmra.mrb[0].mxu0 %v1387
    %v1423 = vpop.f32.mrb[0].mxu0
    %v1424 = vadd.f32 0.0, %v1423
    %v1425 = vpop.f32.mrb[0].mxu0
    %v1426 = vpop.f32.mrb[0].mxu0
    %v1427 = vpop.f32.mrb[0].mxu0
    %1428 = vdwg.mxu0
    %v1429 = vpack.c.bf16 %v1424, %v1381
    %s1430 = scalar_lea.vmem [#allocation13], 16
    %v1431 = vld [vmem:[%s1430] sm:$0xf]
    %v1432 = vld [vmem:[%s1430 + $0x4] sm:$0xf]
    %v1433 = vld [vmem:[%s1430 + $0x8] sm:$0xf]
    %v1434 = vld [vmem:[%s1430 + $0xc] sm:$0xf]
    %s1435 = scalar_lea.vmem %s13, 1
    %v1436 = vld [vmem:[%s1435] sm:$0x1]
    %v1438 = vlaneseq
    %v1439 = vshrl.u32 %v1438, 7
    %v1440 = vsub.s32 0, %v1439
    %v1441 = vrot.slane %v1436, %v1440
    %v1447 = vunpack.c.l.b16 %v1431
    %v1448 = vunpack.c.l.b16 %v1432
    %v1449 = vunpack.c.l.b16 %v1433
    %v1450 = vunpack.c.l.b16 %v1434
    %v1451 = vpack.c.b16 %v1448, %v1447
    %v1452 = vpack.c.b16 %v1450, %v1449
    %v1456 = vsel %vm186, %v1429, 0
    %1458 = vmatprep.subr.bf16.mxu0 0
    %1459 = vmatpush1.bf16.msra.mxu0 %v1451
    %1460 = vmatprep.subr.bf16.mxu0 0
    %1461 = vmatpush1.bf16.msra.mxu0 %v1452
    %1462 = vmatprep.subr.bf16.mxu0 0
    %1463 = vmatpush1.bf16.msra.mxu0 0
    %1464 = vmatprep.subr.bf16.mxu0 0
    %1465 = vmatpush1.bf16.msra.mxu0 0
    %1466 = vmatprep.subr.bf16.mxu0 0
    %1467 = vmatpush1.bf16.msra.mxu0 0
    %1468 = vmatprep.subr.bf16.mxu0 0
    %1469 = vmatpush1.bf16.msra.mxu0 0
    %1470 = vmatprep.subr.bf16.mxu0 0
    %1471 = vmatpush1.bf16.msra.mxu0 0
    %1472 = vmatprep.subr.bf16.mxu0 0
    %1473 = vmatpush1.bf16.msra.mxu0 0
    %1474 = vmatprep.subr.bf16.mxu0 0
    %1475 = vmatpush1.bf16.msra.mxu0 0
    %1476 = vmatprep.subr.bf16.mxu0 0
    %1477 = vmatpush1.bf16.msra.mxu0 0
    %1478 = vmatprep.subr.bf16.mxu0 0
    %1479 = vmatpush1.bf16.msra.mxu0 0
    %1480 = vmatprep.subr.bf16.mxu0 0
    %1481 = vmatpush1.bf16.msra.mxu0 0
    %1482 = vmatprep.subr.bf16.mxu0 0
    %1483 = vmatpush1.bf16.msra.mxu0 0
    %1484 = vmatprep.subr.bf16.mxu0 0
    %1485 = vmatpush1.bf16.msra.mxu0 0
    %1486 = vmatprep.subr.bf16.mxu0 0
    %1487 = vmatpush1.bf16.msra.mxu0 0
    %1488 = vmatprep.subr.bf16.mxu0 0
    %1489 = vmatpush1.bf16.msra.mxu0 0
    %1490 = vmatprep.mubr.bf16.mxu0 0
    %1491 = vmatmul.mubr.bf16.gmra.mrb[0].mxu0 %v1456
    %v1492 = vpop.f32.mrb[0].mxu0
    %v1493 = vadd.f32 %v1441, %v1492
    %v1494 = vpop.f32.mrb[0].mxu0
    %v1495 = vpop.f32.mrb[0].mxu0
    %v1496 = vadd.f32 %v1441, %v1495
    %v1497 = vpop.f32.mrb[0].mxu0
    %1498 = vdwg.mxu0
    %v1499 = vadd.f32 %v894, %v1493
    %v1500 = vadd.f32 %v895, %v1496
    %v1501 = vsel %vm186, %v1499, 0.0
    %1502 = vadd.xlane.f32.xlu0 %v1501
    %v1503 = vpop.xlane.xlu0 %1502
    %v1504 = vsel %vm186, %v1500, 0.0
    %1505 = vadd.xlane.f32.xlu0 %v1504
    %v1506 = vpop.xlane.xlu0 %1505
    %v1507 = vmul.f32 %v1503, %v857
    %v1508 = vmul.f32 %v1506, %v857
    %v1509 = vsub.f32 %v1499, %v1507
    %v1510 = vsub.f32 %v1500, %v1508
    %v1511 = vmul.f32 %v1509, %v1509
    %v1512 = vmul.f32 %v1510, %v1510
    %v1513 = vsel %vm186, %v1511, 0.0
    %1514 = vadd.xlane.f32.xlu0 %v1513
    %v1515 = vpop.xlane.xlu0 %1514
    %v1516 = vsel %vm186, %v1512, 0.0
    %1517 = vadd.xlane.f32.xlu0 %v1516
    %v1518 = vpop.xlane.xlu0 %1517
    %v1519 = vmul.f32 %v1515, %v857
    %v1520 = vmul.f32 %v1518, %v857
    %v1521 = vadd.f32 %v1519, 1e-05
    %v1522 = vadd.f32 %v1520, 1e-05
    %v1523 = vrsqrt.pop %v1521
    %v1524 = vrsqrt.pop %v1522
    %v1525 = vmul.f32 %v1509, %v1523
    %v1526 = vmul.f32 %v1510, %v1524
    %s1527 = scalar_lea.vmem %s14, 1
    %v1528 = vld [vmem:[%s1527] sm:$0x1]
    %v1530 = vlaneseq
    %v1531 = vshrl.u32 %v1530, 7
    %v1532 = vsub.s32 0, %v1531
    %v1533 = vrot.slane %v1528, %v1532
    %v1535 = vmul.f32 %v1525, %v1533
    %v1536 = vmul.f32 %v1526, %v1533
    %s1537 = scalar_lea.vmem %s15, 1
    %v1538 = vld [vmem:[%s1537] sm:$0x1]
    %v1540 = vlaneseq
    %v1541 = vshrl.u32 %v1540, 7
    %v1542 = vsub.s32 0, %v1541
    %v1543 = vrot.slane %v1538, %v1542
    %v1545 = vadd.f32 %v1535, %v1543
    %v1546 = vadd.f32 %v1536, %v1543
    %v1549 = vrot.slane %v1546, 7
    %vm1550 = vcmask 1041409
    %v1551 = vsel %vm1550, %v1549, %v1545
    %vm1553 = vcmask 254976
    %v1554 = vsel %vm1553, %v1551, 0.0
    %1555 = vadd.xlane.f32.xlu0 %v1554
    %v1556 = vpop.xlane.xlu0 %1555
    %v1557 = vmul.f32 %v1556, %v857
    %v1559 = vrot.slane %v1557, 1
    %v1562 = vsub.f32 %v1545, %v1557
    %v1563 = vsub.f32 %v1546, %v1559
    %v1564 = vmul.f32 %v1562, %v1562
    %v1565 = vmul.f32 %v1563, %v1563
    %v1568 = vrot.slane %v1565, 7
    %v1569 = vsel %vm1550, %v1568, %v1564
    %v1571 = vsel %vm1553, %v1569, 0.0
    %1572 = vadd.xlane.f32.xlu0 %v1571
    %v1573 = vpop.xlane.xlu0 %1572
    %v1574 = vmul.f32 %v1573, %v857
    %v1575 = vadd.f32 %v1574, 1e-05
    %v1576 = vrsqrt.pop %v1575
    %v1578 = vrot.slane %v1576, 1
    %v1581 = vmul.f32 %v1562, %v1576
    %v1582 = vmul.f32 %v1563, %v1578
    %v1583 = vld [vmem:[%s16] sm:$0x1]
    %v1585 = vlaneseq
    %v1586 = vshrl.u32 %v1585, 7
    %v1587 = vsub.s32 0, %v1586
    %v1588 = vrot.slane %v1583, %v1587
    %v1590 = vmul.f32 %v1581, %v1588
    %v1591 = vmul.f32 %v1582, %v1588
    %v1592 = vld [vmem:[%s17] sm:$0x1]
    %v1594 = vlaneseq
    %v1595 = vshrl.u32 %v1594, 7
    %v1596 = vsub.s32 0, %v1595
    %v1597 = vrot.slane %v1592, %v1596
    %v1599 = vadd.f32 %v1590, %v1597
    %v1600 = vadd.f32 %v1591, %v1597
    %v1603 = vrot.slane %v1600, 7
    %v1604 = vsel %vm1550, %v1603, %v1599
    %1606 = vst.msk [vmem:[#allocation14] sm:$0x3] %vm1553, %v1604
    // Predicated region
    $region102: #{tpu_custom_call.1} parent=1 // pred_check
      _
    $region103: #{tpu_custom_call.1} parent=1 // pred_check_branch
      %1608 = sbr.rel (0) target = $region105
    $region104: #{tpu_custom_call.1} parent=1 // pred_region
      %s1610 = ssub.s32 32, 32
      %1611 = vsyncadd [#allocation4], %s1610
      %s1613 = sshll.u32 [#allocation14], 4
      %s1614 = int_to_ptr.vmem [resolvable:$true] %s1613
      %1616 = dma.vmem_to_hbm [thread:$0]  %s1614, 32, %s18, [#allocation4]
    $region105: #{tpu_custom_call.1} parent=1 // pred_fallthru
      _
    // Predicated region
    $region106: #{tpu_custom_call.1} parent=1 // pred_check
      _
    $region107: #{tpu_custom_call.1} parent=1 // pred_check_branch
      %1618 = sbr.rel (0) target = $region109
    $region108: #{tpu_custom_call.1} parent=1 // pred_region
      %1619 = dma.done [#allocation4], 32
    $region109: #{tpu_custom_call.1} parent=1 // pred_fallthru
      _
    %1620 = vsyncpa [#allocation3], 1
    %1621 = vsyncpa [#allocation6], 1
    %1622 = vsyncpa [#allocation9], 1
    %1623 = vsyncpa [#allocation12], 1
    %1624 = vsyncpa [#allocation4], 1

</llo_original>
